<compile_context>
chip_gen: v6e
topology: v6e:2x2x1
jax: 0.10.0
libtpu: 0.0.40
codegen_flags: <defaults>
</compile_context>

<pallas_src>
import jax
import jax.numpy as jnp
from jax.experimental import pallas as pl
from jax.experimental.pallas import tpu as pltpu


def _downsample_kernel(taps_ref, w_ref, bias_ref, out_ref):
    """One row-band of: leaky_relu(sum_k taps_k @ W_k + bias).

    taps_ref: (6, br, Wph, Cin)  bf16 -- 3 row taps x {even, odd} column phases
    w_ref:    (9, Cin, Cout)     bf16 -- per-(kh,kw) weights, BN scale folded in
    bias_ref: (1, Cout)          f32  -- folded BN bias
    out_ref:  (br, Wo_pad, Cout) f32
    """
    br, wo_pad, cout = out_ref.shape
    cin = taps_ref.shape[-1]

    acc = jnp.zeros((br * wo_pad, cout), jnp.float32)
    for kh in range(3):
        for kw in range(3):
            t = 2 * kh + (1 if kw == 1 else 0)   # which phase tensor feeds this tap
            off = 1 if kw == 2 else 0            # column offset inside the phase
            x = taps_ref[t, :, off:off + wo_pad, :]          # (br, Wo_pad, Cin) bf16
            x2 = x.reshape(br * wo_pad, cin)                 # collapse to a 2-D MXU operand
            acc = acc + jnp.dot(x2, w_ref[3 * kh + kw],
                                preferred_element_type=jnp.float32)

    y = acc + bias_ref[...]                       # BN bias (scale already in W)
    y = jnp.where(y >= 0.0, y, 0.01 * y)          # LeakyReLU(negative_slope=0.01)
    out_ref[...] = y.reshape(br, wo_pad, cout).astype(out_ref.dtype)


def _pick_block_rows(m, wo_pad, c):
    """Row-band size: a few thousand output pixels / ~<2 MB of bf16 tap data per step."""
    target_pix = max(256, min(4096, (256 * 1024) // max(c, 1)))
    return max(1, min(m, max(1, target_pix // wo_pad)))


def downsample_conv_bn_lrelu(x, w, scale, bias, *, compute_dtype=jnp.bfloat16):
    """x: (N,H,W,C) f32 NHWC; w: (3,3,C,Cout) HWIO; scale/bias: (Cout,).

    Returns (N, Ho, Wo, Cout) f32 with Ho=(H+1)//2, Wo=(W+1)//2
    (Conv2d k=3, stride=2, reflect padding=1)."""
    N, H, W, C = x.shape
    Cout = w.shape[-1]
    Ho, Wo = (H + 1) // 2, (W + 1) // 2
    wo_pad = max(8, ((Wo + 7) // 8) * 8)   # keep the in-kernel (r,W,C)->(r*W,C) collapse aligned
    wph = wo_pad + 1                       # phase width (one extra column for the kw=2 shift)

    # Fold BN scale into the conv weights; bf16 operands, f32 bias.
    w9 = (w * scale).reshape(9, C, Cout).astype(compute_dtype)
    bias2 = bias.reshape(1, Cout).astype(jnp.float32)

    # Reflect padding (padding=1, padding_mode='reflect'), then zero-pad up to the tap grid.
    xp = jnp.pad(x.astype(compute_dtype), ((0, 0), (1, 1), (1, 1), (0, 0)), mode="reflect")
    xp = jnp.pad(xp, ((0, 0),
                      (0, 2 * Ho + 2 - (H + 2)),
                      (0, 2 * wph - (W + 2)),
                      (0, 0)))

    # 6 phase tensors (pure re-layout, no im2col materialization): row tap kh in {0,1,2}
    # x column parity p in {even, odd}.  Output pixel (ho, wo), tap (kh, kw) reads
    # phase[2*kh + (kw==1)] at row ho, column wo + (kw==2).
    taps = jnp.stack(
        [xp[:, kh:kh + 2 * Ho:2, p::2, :] for kh in range(3) for p in range(2)],
        axis=0,
    ).reshape(6, N * Ho, wph, C)

    M = N * Ho
    block_rows = _pick_block_rows(M, wo_pad, C)
    num_blocks = pl.cdiv(M, block_rows)
    m_pad = num_blocks * block_rows
    if m_pad != M:   # arbitrary N*H*W supported: pad rows instead of asserting divisibility
        taps = jnp.pad(taps, ((0, 0), (0, m_pad - M), (0, 0), (0, 0)))

    out = pl.pallas_call(
        _downsample_kernel,
        out_shape=jax.ShapeDtypeStruct((m_pad, wo_pad, Cout), jnp.float32),
        grid=(num_blocks,),
        in_specs=[
            pl.BlockSpec((6, block_rows, wph, C), lambda i: (0, i, 0, 0)),
            pl.BlockSpec((9, C, Cout), lambda i: (0, 0, 0)),
            pl.BlockSpec((1, Cout), lambda i: (0, 0)),
        ],
        out_specs=pl.BlockSpec((block_rows, wo_pad, Cout), lambda i: (i, 0, 0)),
        compiler_params=pltpu.CompilerParams(
            dimension_semantics=("parallel",),
            vmem_limit_bytes=32 * 1024 * 1024,   # raise v5e's 16 MiB default scoped VMEM
        ),
    )(taps, w9, bias2)

    return out[:M, :Wo, :].reshape(N, Ho, Wo, Cout)


def init_downsample_params(key, channel):
    """Deterministic synthetic Conv2d + BatchNorm2d (eval-mode) parameters."""
    kw, kg, kb, km, kv = jax.random.split(key, 5)
    eps = 1e-5
    w = jax.random.normal(kw, (3, 3, channel, channel), jnp.float32) * 0.1   # HWIO
    gamma = jax.random.uniform(kg, (channel,), jnp.float32, 0.5, 1.5)
    beta = jax.random.normal(kb, (channel,), jnp.float32) * 0.1
    running_mean = jax.random.normal(km, (channel,), jnp.float32) * 0.1
    running_var = jax.random.uniform(kv, (channel,), jnp.float32, 0.5, 1.5)
    scale = gamma / jnp.sqrt(running_var + eps)
    bias = beta - running_mean * scale
    return w, scale, bias


def downsample_forward(x_nchw, params):
    """Full DownSample forward (eval mode). Input/output NCHW like PyTorch."""
    # TODO(synk): BatchNorm2d training-mode batch statistics / running-stat updates are
    # not implemented; eval-mode running stats are folded into the conv weights + bias.
    w, scale, bias = params
    x_nhwc = jnp.transpose(x_nchw, (0, 2, 3, 1))   # NCHW -> NHWC
    y = downsample_conv_bn_lrelu(x_nhwc, w, scale, bias)
    return jnp.transpose(y, (0, 3, 1, 2))          # NHWC -> NCHW


def _reference_downsample(x_nchw, params):
    """Pure-JAX/XLA reference (f32) for numerical validation."""
    w, scale, bias = params
    x_nhwc = jnp.transpose(x_nchw, (0, 2, 3, 1))
    xp = jnp.pad(x_nhwc, ((0, 0), (1, 1), (1, 1), (0, 0)), mode="reflect")
    y = jax.lax.conv_general_dilated(
        xp, w, window_strides=(2, 2), padding="VALID",
        dimension_numbers=("NHWC", "HWIO", "NHWC"))
    y = y * scale + bias
    y = jnp.where(y >= 0.0, y, 0.01 * y)
    return jnp.transpose(y, (0, 3, 1, 2))


if __name__ == "__main__":
    key = jax.random.PRNGKey(0)
    k_x, k_p = jax.random.split(key)

    channel = 4
    x_in = jax.random.normal(k_x, (2, channel, 16, 16), jnp.float32)  # NCHW
    params = init_downsample_params(k_p, channel)

    y = jax.jit(downsample_forward)(x_in, params)
    jax.block_until_ready(y)

    assert y.shape == (2, channel, 8, 8), y.shape
    assert bool(jnp.all(jnp.isfinite(y)))

    # Validate against the XLA reference (loose tolerance: bf16 matmul operands).
    y_ref = _reference_downsample(x_in, params)
    assert bool(jnp.allclose(y, y_ref, atol=5e-2, rtol=5e-2)), \
        float(jnp.max(jnp.abs(y - y_ref)))

    print("KERNEL_OK")
</pallas_src>

<mosaic_0001>
module attributes {stable_mosaic.version = 11 : i64} {
  func.func @_downsample_kernel(%arg0: i32, %arg1: memref<6x16x9x4xbf16, #tpu.memory_space<vmem>>, %arg2: memref<9x4x4xbf16, #tpu.memory_space<vmem>>, %arg3: memref<1x4xf32, #tpu.memory_space<vmem>>, %arg4: memref<16x8x4xf32, #tpu.memory_space<vmem>>) attributes {dimension_semantics = [#tpu.dimension_semantics<parallel>], iteration_bounds = array<i64: 1>, scalar_prefetch = 0 : i64, scratch_operands = 0 : i64, tpu.core_type = #tpu.core_type<tc>, window_params = [{transform_indices = @transform_0, window_bounds = array<i64: 6, 16, 9, 4>}, {pipeline_mode = #tpu.pipeline_mode<synchronous>, transform_indices = @transform_1, window_bounds = array<i64: 9, 4, 4>}, {pipeline_mode = #tpu.pipeline_mode<synchronous>, transform_indices = @transform_2, window_bounds = array<i64: 1, 4>}, {transform_indices = @transform_3, window_bounds = array<i64: 16, 8, 4>}]} {
    %cst = arith.constant 0.000000e+00 : f32
    %0 = vector.broadcast %cst : f32 to vector<128x4xf32>
    %c0 = arith.constant 0 : index
    %c0_0 = arith.constant 0 : index
    %c0_1 = arith.constant 0 : index
    %c0_2 = arith.constant 0 : index
    %1 = vector.load %arg1[%c0, %c0_0, %c0_1, %c0_2] : memref<6x16x9x4xbf16, #tpu.memory_space<vmem>>, vector<1x16x8x4xbf16>
    %2 = vector.shape_cast %1 : vector<1x16x8x4xbf16> to vector<16x8x4xbf16>
    %3 = vector.shape_cast %2 : vector<16x8x4xbf16> to vector<128x4xbf16>
    %c0_3 = arith.constant 0 : index
    %c0_4 = arith.constant 0 : index
    %c0_5 = arith.constant 0 : index
    %4 = vector.load %arg2[%c0_3, %c0_4, %c0_5] : memref<9x4x4xbf16, #tpu.memory_space<vmem>>, vector<1x4x4xbf16>
    %5 = vector.shape_cast %4 : vector<1x4x4xbf16> to vector<4x4xbf16>
    %cst_6 = arith.constant dense<0.000000e+00> : vector<128x4xf32>
    %6 = tpu.matmul %3, %5, %cst_6 {dimension_numbers = #tpu.dot_dimension_numbers<[1], [0], [0], [1], [0, 0, 1, 1], [], []>} : vector<128x4xbf16>, vector<4x4xbf16>, vector<128x4xf32> -> vector<128x4xf32>
    %7 = arith.addf %0, %6 : vector<128x4xf32>
    %c1 = arith.constant 1 : index
    %c0_7 = arith.constant 0 : index
    %c0_8 = arith.constant 0 : index
    %c0_9 = arith.constant 0 : index
    %8 = vector.load %arg1[%c1, %c0_7, %c0_8, %c0_9] : memref<6x16x9x4xbf16, #tpu.memory_space<vmem>>, vector<1x16x8x4xbf16>
    %9 = vector.shape_cast %8 : vector<1x16x8x4xbf16> to vector<16x8x4xbf16>
    %10 = vector.shape_cast %9 : vector<16x8x4xbf16> to vector<128x4xbf16>
    %c1_10 = arith.constant 1 : index
    %c0_11 = arith.constant 0 : index
    %c0_12 = arith.constant 0 : index
    %11 = vector.load %arg2[%c1_10, %c0_11, %c0_12] : memref<9x4x4xbf16, #tpu.memory_space<vmem>>, vector<1x4x4xbf16>
    %12 = vector.shape_cast %11 : vector<1x4x4xbf16> to vector<4x4xbf16>
    %cst_13 = arith.constant dense<0.000000e+00> : vector<128x4xf32>
    %13 = tpu.matmul %10, %12, %cst_13 {dimension_numbers = #tpu.dot_dimension_numbers<[1], [0], [0], [1], [0, 0, 1, 1], [], []>} : vector<128x4xbf16>, vector<4x4xbf16>, vector<128x4xf32> -> vector<128x4xf32>
    %14 = arith.addf %7, %13 : vector<128x4xf32>
    %c0_14 = arith.constant 0 : index
    %c0_15 = arith.constant 0 : index
    %c1_16 = arith.constant 1 : index
    %c0_17 = arith.constant 0 : index
    %15 = vector.load %arg1[%c0_14, %c0_15, %c1_16, %c0_17] : memref<6x16x9x4xbf16, #tpu.memory_space<vmem>>, vector<1x16x8x4xbf16>
    %16 = vector.shape_cast %15 : vector<1x16x8x4xbf16> to vector<16x8x4xbf16>
    %17 = vector.shape_cast %16 : vector<16x8x4xbf16> to vector<128x4xbf16>
    %c2 = arith.constant 2 : index
    %c0_18 = arith.constant 0 : index
    %c0_19 = arith.constant 0 : index
    %18 = vector.load %arg2[%c2, %c0_18, %c0_19] : memref<9x4x4xbf16, #tpu.memory_space<vmem>>, vector<1x4x4xbf16>
    %19 = vector.shape_cast %18 : vector<1x4x4xbf16> to vector<4x4xbf16>
    %cst_20 = arith.constant dense<0.000000e+00> : vector<128x4xf32>
    %20 = tpu.matmul %17, %19, %cst_20 {dimension_numbers = #tpu.dot_dimension_numbers<[1], [0], [0], [1], [0, 0, 1, 1], [], []>} : vector<128x4xbf16>, vector<4x4xbf16>, vector<128x4xf32> -> vector<128x4xf32>
    %21 = arith.addf %14, %20 : vector<128x4xf32>
    %c2_21 = arith.constant 2 : index
    %c0_22 = arith.constant 0 : index
    %c0_23 = arith.constant 0 : index
    %c0_24 = arith.constant 0 : index
    %22 = vector.load %arg1[%c2_21, %c0_22, %c0_23, %c0_24] : memref<6x16x9x4xbf16, #tpu.memory_space<vmem>>, vector<1x16x8x4xbf16>
    %23 = vector.shape_cast %22 : vector<1x16x8x4xbf16> to vector<16x8x4xbf16>
    %24 = vector.shape_cast %23 : vector<16x8x4xbf16> to vector<128x4xbf16>
    %c3 = arith.constant 3 : index
    %c0_25 = arith.constant 0 : index
    %c0_26 = arith.constant 0 : index
    %25 = vector.load %arg2[%c3, %c0_25, %c0_26] : memref<9x4x4xbf16, #tpu.memory_space<vmem>>, vector<1x4x4xbf16>
    %26 = vector.shape_cast %25 : vector<1x4x4xbf16> to vector<4x4xbf16>
    %cst_27 = arith.constant dense<0.000000e+00> : vector<128x4xf32>
    %27 = tpu.matmul %24, %26, %cst_27 {dimension_numbers = #tpu.dot_dimension_numbers<[1], [0], [0], [1], [0, 0, 1, 1], [], []>} : vector<128x4xbf16>, vector<4x4xbf16>, vector<128x4xf32> -> vector<128x4xf32>
    %28 = arith.addf %21, %27 : vector<128x4xf32>
    %c3_28 = arith.constant 3 : index
    %c0_29 = arith.constant 0 : index
    %c0_30 = arith.constant 0 : index
    %c0_31 = arith.constant 0 : index
    %29 = vector.load %arg1[%c3_28, %c0_29, %c0_30, %c0_31] : memref<6x16x9x4xbf16, #tpu.memory_space<vmem>>, vector<1x16x8x4xbf16>
    %30 = vector.shape_cast %29 : vector<1x16x8x4xbf16> to vector<16x8x4xbf16>
    %31 = vector.shape_cast %30 : vector<16x8x4xbf16> to vector<128x4xbf16>
    %c4 = arith.constant 4 : index
    %c0_32 = arith.constant 0 : index
    %c0_33 = arith.constant 0 : index
    %32 = vector.load %arg2[%c4, %c0_32, %c0_33] : memref<9x4x4xbf16, #tpu.memory_space<vmem>>, vector<1x4x4xbf16>
    %33 = vector.shape_cast %32 : vector<1x4x4xbf16> to vector<4x4xbf16>
    %cst_34 = arith.constant dense<0.000000e+00> : vector<128x4xf32>
    %34 = tpu.matmul %31, %33, %cst_34 {dimension_numbers = #tpu.dot_dimension_numbers<[1], [0], [0], [1], [0, 0, 1, 1], [], []>} : vector<128x4xbf16>, vector<4x4xbf16>, vector<128x4xf32> -> vector<128x4xf32>
    %35 = arith.addf %28, %34 : vector<128x4xf32>
    %c2_35 = arith.constant 2 : index
    %c0_36 = arith.constant 0 : index
    %c1_37 = arith.constant 1 : index
    %c0_38 = arith.constant 0 : index
    %36 = vector.load %arg1[%c2_35, %c0_36, %c1_37, %c0_38] : memref<6x16x9x4xbf16, #tpu.memory_space<vmem>>, vector<1x16x8x4xbf16>
    %37 = vector.shape_cast %36 : vector<1x16x8x4xbf16> to vector<16x8x4xbf16>
    %38 = vector.shape_cast %37 : vector<16x8x4xbf16> to vector<128x4xbf16>
    %c5 = arith.constant 5 : index
    %c0_39 = arith.constant 0 : index
    %c0_40 = arith.constant 0 : index
    %39 = vector.load %arg2[%c5, %c0_39, %c0_40] : memref<9x4x4xbf16, #tpu.memory_space<vmem>>, vector<1x4x4xbf16>
    %40 = vector.shape_cast %39 : vector<1x4x4xbf16> to vector<4x4xbf16>
    %cst_41 = arith.constant dense<0.000000e+00> : vector<128x4xf32>
    %41 = tpu.matmul %38, %40, %cst_41 {dimension_numbers = #tpu.dot_dimension_numbers<[1], [0], [0], [1], [0, 0, 1, 1], [], []>} : vector<128x4xbf16>, vector<4x4xbf16>, vector<128x4xf32> -> vector<128x4xf32>
    %42 = arith.addf %35, %41 : vector<128x4xf32>
    %c4_42 = arith.constant 4 : index
    %c0_43 = arith.constant 0 : index
    %c0_44 = arith.constant 0 : index
    %c0_45 = arith.constant 0 : index
    %43 = vector.load %arg1[%c4_42, %c0_43, %c0_44, %c0_45] : memref<6x16x9x4xbf16, #tpu.memory_space<vmem>>, vector<1x16x8x4xbf16>
    %44 = vector.shape_cast %43 : vector<1x16x8x4xbf16> to vector<16x8x4xbf16>
    %45 = vector.shape_cast %44 : vector<16x8x4xbf16> to vector<128x4xbf16>
    %c6 = arith.constant 6 : index
    %c0_46 = arith.constant 0 : index
    %c0_47 = arith.constant 0 : index
    %46 = vector.load %arg2[%c6, %c0_46, %c0_47] : memref<9x4x4xbf16, #tpu.memory_space<vmem>>, vector<1x4x4xbf16>
    %47 = vector.shape_cast %46 : vector<1x4x4xbf16> to vector<4x4xbf16>
    %cst_48 = arith.constant dense<0.000000e+00> : vector<128x4xf32>
    %48 = tpu.matmul %45, %47, %cst_48 {dimension_numbers = #tpu.dot_dimension_numbers<[1], [0], [0], [1], [0, 0, 1, 1], [], []>} : vector<128x4xbf16>, vector<4x4xbf16>, vector<128x4xf32> -> vector<128x4xf32>
    %49 = arith.addf %42, %48 : vector<128x4xf32>
    %c5_49 = arith.constant 5 : index
    %c0_50 = arith.constant 0 : index
    %c0_51 = arith.constant 0 : index
    %c0_52 = arith.constant 0 : index
    %50 = vector.load %arg1[%c5_49, %c0_50, %c0_51, %c0_52] : memref<6x16x9x4xbf16, #tpu.memory_space<vmem>>, vector<1x16x8x4xbf16>
    %51 = vector.shape_cast %50 : vector<1x16x8x4xbf16> to vector<16x8x4xbf16>
    %52 = vector.shape_cast %51 : vector<16x8x4xbf16> to vector<128x4xbf16>
    %c7 = arith.constant 7 : index
    %c0_53 = arith.constant 0 : index
    %c0_54 = arith.constant 0 : index
    %53 = vector.load %arg2[%c7, %c0_53, %c0_54] : memref<9x4x4xbf16, #tpu.memory_space<vmem>>, vector<1x4x4xbf16>
    %54 = vector.shape_cast %53 : vector<1x4x4xbf16> to vector<4x4xbf16>
    %cst_55 = arith.constant dense<0.000000e+00> : vector<128x4xf32>
    %55 = tpu.matmul %52, %54, %cst_55 {dimension_numbers = #tpu.dot_dimension_numbers<[1], [0], [0], [1], [0, 0, 1, 1], [], []>} : vector<128x4xbf16>, vector<4x4xbf16>, vector<128x4xf32> -> vector<128x4xf32>
    %56 = arith.addf %49, %55 : vector<128x4xf32>
    %c4_56 = arith.constant 4 : index
    %c0_57 = arith.constant 0 : index
    %c1_58 = arith.constant 1 : index
    %c0_59 = arith.constant 0 : index
    %57 = vector.load %arg1[%c4_56, %c0_57, %c1_58, %c0_59] : memref<6x16x9x4xbf16, #tpu.memory_space<vmem>>, vector<1x16x8x4xbf16>
    %58 = vector.shape_cast %57 : vector<1x16x8x4xbf16> to vector<16x8x4xbf16>
    %59 = vector.shape_cast %58 : vector<16x8x4xbf16> to vector<128x4xbf16>
    %c8 = arith.constant 8 : index
    %c0_60 = arith.constant 0 : index
    %c0_61 = arith.constant 0 : index
    %60 = vector.load %arg2[%c8, %c0_60, %c0_61] : memref<9x4x4xbf16, #tpu.memory_space<vmem>>, vector<1x4x4xbf16>
    %61 = vector.shape_cast %60 : vector<1x4x4xbf16> to vector<4x4xbf16>
    %cst_62 = arith.constant dense<0.000000e+00> : vector<128x4xf32>
    %62 = tpu.matmul %59, %61, %cst_62 {dimension_numbers = #tpu.dot_dimension_numbers<[1], [0], [0], [1], [0, 0, 1, 1], [], []>} : vector<128x4xbf16>, vector<4x4xbf16>, vector<128x4xf32> -> vector<128x4xf32>
    %63 = arith.addf %56, %62 : vector<128x4xf32>
    %c0_63 = arith.constant 0 : index
    %c0_64 = arith.constant 0 : index
    %64 = vector.load %arg3[%c0_63, %c0_64] : memref<1x4xf32, #tpu.memory_space<vmem>>, vector<1x4xf32>
    %65 = vector.broadcast %64 : vector<1x4xf32> to vector<128x4xf32>
    %66 = arith.addf %63, %65 : vector<128x4xf32>
    %cst_65 = arith.constant 0.000000e+00 : f32
    %67 = vector.broadcast %cst_65 : f32 to vector<128x4xf32>
    %68 = arith.cmpf oge, %66, %67 : vector<128x4xf32>
    %cst_66 = arith.constant 0.00999999977 : f32
    %69 = vector.broadcast %cst_66 : f32 to vector<128x4xf32>
    %70 = arith.mulf %69, %66 : vector<128x4xf32>
    %71 = arith.select %68, %66, %70 : vector<128x4xi1>, vector<128x4xf32>
    %72 = vector.shape_cast %71 : vector<128x4xf32> to vector<16x8x4xf32>
    %c0_67 = arith.constant 0 : index
    %c0_68 = arith.constant 0 : index
    %c0_69 = arith.constant 0 : index
    %73 = vector.load %arg4[%c0_67, %c0_68, %c0_69] : memref<16x8x4xf32, #tpu.memory_space<vmem>>, vector<16x8x4xf32>
    tpu.vector_store %arg4[%c0_67, %c0_68, %c0_69], %72 {strides = array<i32>} : memref<16x8x4xf32, #tpu.memory_space<vmem>>, vector<16x8x4xf32>,
    return
  }
  func.func @transform_0(%arg0: i32) -> (i32, i32, i32, i32) {
    %c0_i32 = arith.constant 0 : i32
    %c0_i32_0 = arith.constant 0 : i32
    %c0_i32_1 = arith.constant 0 : i32
    %c0_i32_2 = arith.constant 0 : i32
    return %c0_i32, %arg0, %c0_i32_0, %c0_i32_1 : i32, i32, i32, i32
  }
  func.func @transform_1(%arg0: i32) -> (i32, i32, i32) {
    %c0_i32 = arith.constant 0 : i32
    %c0_i32_0 = arith.constant 0 : i32
    %c0_i32_1 = arith.constant 0 : i32
    %c0_i32_2 = arith.constant 0 : i32
    return %c0_i32, %c0_i32_0, %c0_i32_1 : i32, i32, i32
  }
  func.func @transform_2(%arg0: i32) -> (i32, i32) {
    %c0_i32 = arith.constant 0 : i32
    %c0_i32_0 = arith.constant 0 : i32
    %c0_i32_1 = arith.constant 0 : i32
    return %c0_i32, %c0_i32_0 : i32, i32
  }
  func.func @transform_3(%arg0: i32) -> (i32, i32, i32) {
    %c0_i32 = arith.constant 0 : i32
    %c0_i32_0 = arith.constant 0 : i32
    %c0_i32_1 = arith.constant 0 : i32
    return %arg0, %c0_i32, %c0_i32_0 : i32, i32, i32
  }
}

</mosaic_0001>

<llo_original>
// kernel: downsample_forward.1
$region0: #{downsample_forward.1}
  #allocation0 [shape = 'u32[]', space=smem, size = 0x4, offset = 0x4, fixed_abs, tag = 'smem constant byte address 0x4 - core index']
  #allocation1 [shape = 'u32[144,128]{1,0:T(1,128)}', space=vmem, size = 0x12000, scoped, tag = 'internal scratch']
  %s0 = inlined_call_operand.vmem [shape: bf16[6,16,9,4], index: 0, kind: input, shape index: {}]
  %s1 = inlined_call_operand.vmem [shape: bf16[9,4,4], index: 1, kind: input, shape index: {}]
  %s2 = inlined_call_operand.vmem [shape: f32[1,4], index: 2, kind: input, shape index: {}]
  %s3 = inlined_call_operand.vmem [shape: f32[16,8,4], index: 3, kind: output, shape index: {}]
  %s4 = sld [smem:[#allocation0]]
  $region22: #{downsample_forward.1} parent=0
    _
  %s6 = ssub.s32 1, %s4
  %s7 = scalar_select 0, %s6, %s4
  // Predicated region
  $region2: #{downsample_forward.1} parent=0 // pred_check
    _
  $region3: #{downsample_forward.1} parent=0 // pred_check_branch
    %9 = sbr.rel (0) target = $region5
  $region4: #{downsample_forward.1} parent=0 // pred_region
    _
  $region5: #{downsample_forward.1} parent=0 // pred_fallthru
    _
  // Predicated region
  $region6: #{downsample_forward.1} parent=0 // pred_check
    _
  $region7: #{downsample_forward.1} parent=0 // pred_check_branch
    %11 = sbr.rel (0) target = $region9
  $region8: #{downsample_forward.1} parent=0 // pred_region
    _
  $region9: #{downsample_forward.1} parent=0 // pred_fallthru
    _
  // Predicated region
  $region10: #{downsample_forward.1} parent=0 // pred_check
    _
  $region11: #{downsample_forward.1} parent=0 // pred_check_branch
    %13 = sbr.rel (0) target = $region13
  $region12: #{downsample_forward.1} parent=0 // pred_region
    _
  $region13: #{downsample_forward.1} parent=0 // pred_fallthru
    _
  %v15 = vld [vmem:[%s0] sm:$0xf]
  %v16 = vld [vmem:[%s0 + $0x8] sm:$0xf]
  %v17 = vld [vmem:[%s0 + $0x10] sm:$0xf]
  %v18 = vld [vmem:[%s0 + $0x18] sm:$0xf]
  %v19 = vld [vmem:[%s0 + $0x20] sm:$0xf]
  %v20 = vld [vmem:[%s0 + $0x28] sm:$0xf]
  %v21 = vld [vmem:[%s0 + $0x30] sm:$0xf]
  %v22 = vld [vmem:[%s0 + $0x38] sm:$0xf]
  %v23 = vld [vmem:[%s0 + $0x40] sm:$0xf]
  %v24 = vld [vmem:[%s0 + $0x48] sm:$0xf]
  %v25 = vld [vmem:[%s0 + $0x50] sm:$0xf]
  %v26 = vld [vmem:[%s0 + $0x58] sm:$0xf]
  %v27 = vld [vmem:[%s0 + $0x60] sm:$0xf]
  %v28 = vld [vmem:[%s0 + $0x68] sm:$0xf]
  %v29 = vld [vmem:[%s0 + $0x70] sm:$0xf]
  %v30 = vld [vmem:[%s0 + $0x78] sm:$0xf]
  %v31 = vld [vmem:[%s1] sm:$0x3]
  %s32 = scalar_lea.vmem %s0, 128
  %v33 = vld [vmem:[%s32] sm:$0xf]
  %v34 = vld [vmem:[%s32 + $0x8] sm:$0xf]
  %v35 = vld [vmem:[%s32 + $0x10] sm:$0xf]
  %v36 = vld [vmem:[%s32 + $0x18] sm:$0xf]
  %v37 = vld [vmem:[%s32 + $0x20] sm:$0xf]
  %v38 = vld [vmem:[%s32 + $0x28] sm:$0xf]
  %v39 = vld [vmem:[%s32 + $0x30] sm:$0xf]
  %v40 = vld [vmem:[%s32 + $0x38] sm:$0xf]
  %v41 = vld [vmem:[%s32 + $0x40] sm:$0xf]
  %v42 = vld [vmem:[%s32 + $0x48] sm:$0xf]
  %v43 = vld [vmem:[%s32 + $0x50] sm:$0xf]
  %v44 = vld [vmem:[%s32 + $0x58] sm:$0xf]
  %v45 = vld [vmem:[%s32 + $0x60] sm:$0xf]
  %v46 = vld [vmem:[%s32 + $0x68] sm:$0xf]
  %v47 = vld [vmem:[%s32 + $0x70] sm:$0xf]
  %v48 = vld [vmem:[%s32 + $0x78] sm:$0xf]
  %s49 = scalar_lea.vmem %s1, 2
  %v50 = vld [vmem:[%s49] sm:$0x3]
  %v67 = vunpack.c.l.b16 %v33
  %v68 = vunpack.c.l.b16 %v34
  %v69 = vunpack.c.l.b16 %v35
  %v70 = vunpack.c.l.b16 %v36
  %v71 = vunpack.c.l.b16 %v37
  %v72 = vunpack.c.l.b16 %v38
  %v73 = vunpack.c.l.b16 %v39
  %v74 = vunpack.c.l.b16 %v40
  %v75 = vunpack.c.l.b16 %v41
  %v76 = vunpack.c.l.b16 %v42
  %v77 = vunpack.c.l.b16 %v43
  %v78 = vunpack.c.l.b16 %v44
  %v79 = vunpack.c.l.b16 %v45
  %v80 = vunpack.c.l.b16 %v46
  %v81 = vunpack.c.l.b16 %v47
  %v82 = vunpack.c.l.b16 %v48
  %v83 = vpack.c.b16 %v68, %v67
  %v84 = vpack.c.b16 %v70, %v69
  %v85 = vpack.c.b16 %v72, %v71
  %v86 = vpack.c.b16 %v74, %v73
  %v87 = vpack.c.b16 %v76, %v75
  %v88 = vpack.c.b16 %v78, %v77
  %v89 = vpack.c.b16 %v80, %v79
  %v90 = vpack.c.b16 %v82, %v81
  %vm91 = vcmask 31744
  %v93 = vsel %vm91, %v83, 0
  %v96 = vsel %vm91, %v84, 0
  %v99 = vsel %vm91, %v85, 0
  %v102 = vsel %vm91, %v86, 0
  %v105 = vsel %vm91, %v87, 0
  %v108 = vsel %vm91, %v88, 0
  %v111 = vsel %vm91, %v89, 0
  %v114 = vsel %vm91, %v90, 0
  %vm116 = vcmask 1041408
  %v118 = vsel %vm116, %v50, 0
  %120 = vmatprep.subr.bf16.mxu0 0
  %121 = vmatpush1.bf16.msra.mxu0 0
  %122 = vmatprep.subr.bf16.mxu0 0
  %123 = vmatpush1.bf16.msra.mxu0 0
  %124 = vmatprep.subr.bf16.mxu0 0
  %125 = vmatpush1.bf16.msra.mxu0 0
  %126 = vmatprep.subr.bf16.mxu0 0
  %127 = vmatpush1.bf16.msra.mxu0 0
  %128 = vmatprep.subr.bf16.mxu0 0
  %129 = vmatpush1.bf16.msra.mxu0 0
  %130 = vmatprep.subr.bf16.mxu0 0
  %131 = vmatpush1.bf16.msra.mxu0 0
  %132 = vmatprep.subr.bf16.mxu0 0
  %133 = vmatpush1.bf16.msra.mxu0 0
  %134 = vmatprep.subr.bf16.mxu0 0
  %135 = vmatpush1.bf16.msra.mxu0 %v118
  %136 = vmatprep.subr.bf16.mxu0 0
  %137 = vmatpush2.bf16.msra.mxu0 0
  %138 = vmatprep.subr.bf16.mxu0 0
  %139 = vmatpush2.bf16.msra.mxu0 0
  %140 = vmatprep.subr.bf16.mxu0 0
  %141 = vmatpush2.bf16.msra.mxu0 0
  %142 = vmatprep.subr.bf16.mxu0 0
  %143 = vmatpush2.bf16.msra.mxu0 0
  %144 = vmatprep.subr.bf16.mxu0 0
  %145 = vmatpush2.bf16.msra.mxu0 0
  %146 = vmatprep.subr.bf16.mxu0 0
  %147 = vmatpush2.bf16.msra.mxu0 0
  %148 = vmatprep.subr.bf16.mxu0 0
  %149 = vmatpush2.bf16.msra.mxu0 0
  %150 = vmatprep.subr.bf16.mxu0 0
  %151 = vmatpush2.bf16.msra.mxu0 0
  %152 = vmatprep.mubr.bf16.mxu0 0
  %153 = vmatmul.mubr.bf16.gmra.mxu0 %v93
  %v154 = vpop.f32.mrf.mxu0
  %v155 = vadd.f32 0.0, %v154
  %v156 = vpop.f32.mrf.mxu0
  %v157 = vpop.f32.mrf.mxu0
  %v158 = vadd.f32 0.0, %v157
  %v159 = vpop.f32.mrf.mxu0
  %160 = vmatprep.mubr.bf16.mxu0 0
  %161 = vmatmul.mubr.bf16.gmra.mxu0 %v96
  %v162 = vpop.f32.mrf.mxu0
  %v163 = vadd.f32 0.0, %v162
  %v164 = vpop.f32.mrf.mxu0
  %v165 = vpop.f32.mrf.mxu0
  %v166 = vadd.f32 0.0, %v165
  %v167 = vpop.f32.mrf.mxu0
  %168 = vmatprep.mubr.bf16.mxu0 0
  %169 = vmatmul.mubr.bf16.gmra.mxu0 %v99
  %v170 = vpop.f32.mrf.mxu0
  %v171 = vadd.f32 0.0, %v170
  %v172 = vpop.f32.mrf.mxu0
  %v173 = vpop.f32.mrf.mxu0
  %v174 = vadd.f32 0.0, %v173
  %v175 = vpop.f32.mrf.mxu0
  %176 = vmatprep.mubr.bf16.mxu0 0
  %177 = vmatmul.mubr.bf16.gmra.mxu0 %v102
  %v178 = vpop.f32.mrf.mxu0
  %v179 = vadd.f32 0.0, %v178
  %v180 = vpop.f32.mrf.mxu0
  %v181 = vpop.f32.mrf.mxu0
  %v182 = vadd.f32 0.0, %v181
  %v183 = vpop.f32.mrf.mxu0
  %184 = vmatprep.mubr.bf16.mxu0 0
  %185 = vmatmul.mubr.bf16.gmra.mxu0 %v105
  %v186 = vpop.f32.mrf.mxu0
  %v187 = vadd.f32 0.0, %v186
  %v188 = vpop.f32.mrf.mxu0
  %v189 = vpop.f32.mrf.mxu0
  %v190 = vadd.f32 0.0, %v189
  %v191 = vpop.f32.mrf.mxu0
  %192 = vmatprep.mubr.bf16.mxu0 0
  %193 = vmatmul.mubr.bf16.gmra.mxu0 %v108
  %v194 = vpop.f32.mrf.mxu0
  %v195 = vadd.f32 0.0, %v194
  %v196 = vpop.f32.mrf.mxu0
  %v197 = vpop.f32.mrf.mxu0
  %v198 = vadd.f32 0.0, %v197
  %v199 = vpop.f32.mrf.mxu0
  %200 = vmatprep.mubr.bf16.mxu0 0
  %201 = vmatmul.mubr.bf16.gmra.mxu0 %v111
  %v202 = vpop.f32.mrf.mxu0
  %v203 = vadd.f32 0.0, %v202
  %v204 = vpop.f32.mrf.mxu0
  %v205 = vpop.f32.mrf.mxu0
  %v206 = vadd.f32 0.0, %v205
  %v207 = vpop.f32.mrf.mxu0
  %208 = vmatprep.mubr.bf16.mxu0 0
  %209 = vmatmul.mubr.bf16.gmra.mxu0 %v114
  %v210 = vpop.f32.mrf.mxu0
  %v211 = vadd.f32 0.0, %v210
  %v212 = vpop.f32.mrf.mxu0
  %v213 = vpop.f32.mrf.mxu0
  %v214 = vadd.f32 0.0, %v213
  %v215 = vpop.f32.mrf.mxu0
  %216 = vdwg.mxu0
  %v233 = vunpack.c.l.b16 %v15
  %v234 = vunpack.c.l.b16 %v16
  %v235 = vunpack.c.l.b16 %v17
  %v236 = vunpack.c.l.b16 %v18
  %v237 = vunpack.c.l.b16 %v19
  %v238 = vunpack.c.l.b16 %v20
  %v239 = vunpack.c.l.b16 %v21
  %v240 = vunpack.c.l.b16 %v22
  %v241 = vunpack.c.l.b16 %v23
  %v242 = vunpack.c.l.b16 %v24
  %v243 = vunpack.c.l.b16 %v25
  %v244 = vunpack.c.l.b16 %v26
  %v245 = vunpack.c.l.b16 %v27
  %v246 = vunpack.c.l.b16 %v28
  %v247 = vunpack.c.l.b16 %v29
  %v248 = vunpack.c.l.b16 %v30
  %v249 = vpack.c.b16 %v234, %v233
  %v250 = vpack.c.b16 %v236, %v235
  %v251 = vpack.c.b16 %v238, %v237
  %v252 = vpack.c.b16 %v240, %v239
  %v253 = vpack.c.b16 %v242, %v241
  %v254 = vpack.c.b16 %v244, %v243
  %v255 = vpack.c.b16 %v246, %v245
  %v256 = vpack.c.b16 %v248, %v247
  %v258 = vsel %vm91, %v249, 0
  %v261 = vsel %vm91, %v250, 0
  %v264 = vsel %vm91, %v251, 0
  %v267 = vsel %vm91, %v252, 0
  %v270 = vsel %vm91, %v253, 0
  %v273 = vsel %vm91, %v254, 0
  %v276 = vsel %vm91, %v255, 0
  %v279 = vsel %vm91, %v256, 0
  %v282 = vsel %vm116, %v31, 0
  %284 = vmatprep.subr.bf16.mxu0 0
  %285 = vmatpush1.bf16.msra.mxu0 0
  %286 = vmatprep.subr.bf16.mxu0 0
  %287 = vmatpush1.bf16.msra.mxu0 0
  %288 = vmatprep.subr.bf16.mxu0 0
  %289 = vmatpush1.bf16.msra.mxu0 0
  %290 = vmatprep.subr.bf16.mxu0 0
  %291 = vmatpush1.bf16.msra.mxu0 0
  %292 = vmatprep.subr.bf16.mxu0 0
  %293 = vmatpush1.bf16.msra.mxu0 0
  %294 = vmatprep.subr.bf16.mxu0 0
  %295 = vmatpush1.bf16.msra.mxu0 0
  %296 = vmatprep.subr.bf16.mxu0 0
  %297 = vmatpush1.bf16.msra.mxu0 0
  %298 = vmatprep.subr.bf16.mxu0 0
  %299 = vmatpush1.bf16.msra.mxu0 %v282
  %300 = vmatprep.subr.bf16.mxu0 0
  %301 = vmatpush2.bf16.msra.mxu0 0
  %302 = vmatprep.subr.bf16.mxu0 0
  %303 = vmatpush2.bf16.msra.mxu0 0
  %304 = vmatprep.subr.bf16.mxu0 0
  %305 = vmatpush2.bf16.msra.mxu0 0
  %306 = vmatprep.subr.bf16.mxu0 0
  %307 = vmatpush2.bf16.msra.mxu0 0
  %308 = vmatprep.subr.bf16.mxu0 0
  %309 = vmatpush2.bf16.msra.mxu0 0
  %310 = vmatprep.subr.bf16.mxu0 0
  %311 = vmatpush2.bf16.msra.mxu0 0
  %312 = vmatprep.subr.bf16.mxu0 0
  %313 = vmatpush2.bf16.msra.mxu0 0
  %314 = vmatprep.subr.bf16.mxu0 0
  %315 = vmatpush2.bf16.msra.mxu0 0
  %316 = vmatprep.mubr.bf16.mxu0 0
  %317 = vmatmul.mubr.bf16.gmra.mxu0 %v258
  %v318 = vpop.f32.mrf.mxu0
  %v319 = vadd.f32 %v155, %v318
  %v320 = vpop.f32.mrf.mxu0
  %v321 = vpop.f32.mrf.mxu0
  %v322 = vadd.f32 %v158, %v321
  %v323 = vpop.f32.mrf.mxu0
  %324 = vmatprep.mubr.bf16.mxu0 0
  %325 = vmatmul.mubr.bf16.gmra.mxu0 %v261
  %v326 = vpop.f32.mrf.mxu0
  %v327 = vadd.f32 %v163, %v326
  %v328 = vpop.f32.mrf.mxu0
  %v329 = vpop.f32.mrf.mxu0
  %v330 = vadd.f32 %v166, %v329
  %v331 = vpop.f32.mrf.mxu0
  %332 = vmatprep.mubr.bf16.mxu0 0
  %333 = vmatmul.mubr.bf16.gmra.mxu0 %v264
  %v334 = vpop.f32.mrf.mxu0
  %v335 = vadd.f32 %v171, %v334
  %v336 = vpop.f32.mrf.mxu0
  %v337 = vpop.f32.mrf.mxu0
  %v338 = vadd.f32 %v174, %v337
  %v339 = vpop.f32.mrf.mxu0
  %340 = vmatprep.mubr.bf16.mxu0 0
  %341 = vmatmul.mubr.bf16.gmra.mxu0 %v267
  %v342 = vpop.f32.mrf.mxu0
  %v343 = vadd.f32 %v179, %v342
  %v344 = vpop.f32.mrf.mxu0
  %v345 = vpop.f32.mrf.mxu0
  %v346 = vadd.f32 %v182, %v345
  %v347 = vpop.f32.mrf.mxu0
  %348 = vmatprep.mubr.bf16.mxu0 0
  %349 = vmatmul.mubr.bf16.gmra.mxu0 %v270
  %v350 = vpop.f32.mrf.mxu0
  %v351 = vadd.f32 %v187, %v350
  %v352 = vpop.f32.mrf.mxu0
  %v353 = vpop.f32.mrf.mxu0
  %v354 = vadd.f32 %v190, %v353
  %v355 = vpop.f32.mrf.mxu0
  %356 = vmatprep.mubr.bf16.mxu0 0
  %357 = vmatmul.mubr.bf16.gmra.mxu0 %v273
  %v358 = vpop.f32.mrf.mxu0
  %v359 = vadd.f32 %v195, %v358
  %v360 = vpop.f32.mrf.mxu0
  %v361 = vpop.f32.mrf.mxu0
  %v362 = vadd.f32 %v198, %v361
  %v363 = vpop.f32.mrf.mxu0
  %364 = vmatprep.mubr.bf16.mxu0 0
  %365 = vmatmul.mubr.bf16.gmra.mxu0 %v276
  %v366 = vpop.f32.mrf.mxu0
  %v367 = vadd.f32 %v203, %v366
  %v368 = vpop.f32.mrf.mxu0
  %v369 = vpop.f32.mrf.mxu0
  %v370 = vadd.f32 %v206, %v369
  %v371 = vpop.f32.mrf.mxu0
  %372 = vmatprep.mubr.bf16.mxu0 0
  %373 = vmatmul.mubr.bf16.gmra.mxu0 %v279
  %v374 = vpop.f32.mrf.mxu0
  %v375 = vadd.f32 %v211, %v374
  %v376 = vpop.f32.mrf.mxu0
  %v377 = vpop.f32.mrf.mxu0
  %v378 = vadd.f32 %v214, %v377
  %v379 = vpop.f32.mrf.mxu0
  %380 = vdwg.mxu0
  %v381 = vld [vmem:[%s0] sm:$0xf]
  %v382 = vld [vmem:[%s0 + $0x4] sm:$0x1]
  %v383 = vld [vmem:[%s0 + $0x8] sm:$0xf]
  %v384 = vld [vmem:[%s0 + $0xc] sm:$0x1]
  %v385 = vld [vmem:[%s0 + $0x10] sm:$0xf]
  %v386 = vld [vmem:[%s0 + $0x14] sm:$0x1]
  %v387 = vld [vmem:[%s0 + $0x18] sm:$0xf]
  %v388 = vld [vmem:[%s0 + $0x1c] sm:$0x1]
  %v389 = vld [vmem:[%s0 + $0x20] sm:$0xf]
  %v390 = vld [vmem:[%s0 + $0x24] sm:$0x1]
  %v391 = vld [vmem:[%s0 + $0x28] sm:$0xf]
  %v392 = vld [vmem:[%s0 + $0x2c] sm:$0x1]
  %v393 = vld [vmem:[%s0 + $0x30] sm:$0xf]
  %v394 = vld [vmem:[%s0 + $0x34] sm:$0x1]
  %v395 = vld [vmem:[%s0 + $0x38] sm:$0xf]
  %v396 = vld [vmem:[%s0 + $0x3c] sm:$0x1]
  %v397 = vld [vmem:[%s0 + $0x40] sm:$0xf]
  %v398 = vld [vmem:[%s0 + $0x44] sm:$0x1]
  %v399 = vld [vmem:[%s0 + $0x48] sm:$0xf]
  %v400 = vld [vmem:[%s0 + $0x4c] sm:$0x1]
  %v401 = vld [vmem:[%s0 + $0x50] sm:$0xf]
  %v402 = vld [vmem:[%s0 + $0x54] sm:$0x1]
  %v403 = vld [vmem:[%s0 + $0x58] sm:$0xf]
  %v404 = vld [vmem:[%s0 + $0x5c] sm:$0x1]
  %v405 = vld [vmem:[%s0 + $0x60] sm:$0xf]
  %v406 = vld [vmem:[%s0 + $0x64] sm:$0x1]
  %v407 = vld [vmem:[%s0 + $0x68] sm:$0xf]
  %v408 = vld [vmem:[%s0 + $0x6c] sm:$0x1]
  %v409 = vld [vmem:[%s0 + $0x70] sm:$0xf]
  %v410 = vld [vmem:[%s0 + $0x74] sm:$0x1]
  %v411 = vld [vmem:[%s0 + $0x78] sm:$0xf]
  %v412 = vld [vmem:[%s0 + $0x7c] sm:$0x1]
  %vm413 = vsmask.f32 3328
  %vm414 = vsmask.f32 7440
  %vm415 = vmor %vm413, %vm414
  %v417 = vshrl.u32 %v381, 16
  %v419 = vrot.slane %v417, 4
  %v420 = vshll.u32 %v381, 16
  %v422 = vrot.slane %v420, 5
  %v423 = vor.u32 %v419, %v422
  %v424 = vrot.slane %v423, 4
  %v426 = vshll.u32 %v382, 16
  %v428 = vrot.slane %v426, 5
  %v429 = vsel %vm415, %v424, %v428
  %v431 = vshrl.u32 %v383, 16
  %v433 = vrot.slane %v431, 4
  %v434 = vshll.u32 %v383, 16
  %v436 = vrot.slane %v434, 5
  %v437 = vor.u32 %v433, %v436
  %v438 = vrot.slane %v437, 4
  %v440 = vshll.u32 %v384, 16
  %v442 = vrot.slane %v440, 5
  %v443 = vsel %vm415, %v438, %v442
  %v445 = vshrl.u32 %v385, 16
  %v447 = vrot.slane %v445, 4
  %v448 = vshll.u32 %v385, 16
  %v450 = vrot.slane %v448, 5
  %v451 = vor.u32 %v447, %v450
  %v452 = vrot.slane %v451, 4
  %v454 = vshll.u32 %v386, 16
  %v456 = vrot.slane %v454, 5
  %v457 = vsel %vm415, %v452, %v456
  %v459 = vshrl.u32 %v387, 16
  %v461 = vrot.slane %v459, 4
  %v462 = vshll.u32 %v387, 16
  %v464 = vrot.slane %v462, 5
  %v465 = vor.u32 %v461, %v464
  %v466 = vrot.slane %v465, 4
  %v468 = vshll.u32 %v388, 16
  %v470 = vrot.slane %v468, 5
  %v471 = vsel %vm415, %v466, %v470
  %v473 = vshrl.u32 %v389, 16
  %v475 = vrot.slane %v473, 4
  %v476 = vshll.u32 %v389, 16
  %v478 = vrot.slane %v476, 5
  %v479 = vor.u32 %v475, %v478
  %v480 = vrot.slane %v479, 4
  %v482 = vshll.u32 %v390, 16
  %v484 = vrot.slane %v482, 5
  %v485 = vsel %vm415, %v480, %v484
  %v487 = vshrl.u32 %v391, 16
  %v489 = vrot.slane %v487, 4
  %v490 = vshll.u32 %v391, 16
  %v492 = vrot.slane %v490, 5
  %v493 = vor.u32 %v489, %v492
  %v494 = vrot.slane %v493, 4
  %v496 = vshll.u32 %v392, 16
  %v498 = vrot.slane %v496, 5
  %v499 = vsel %vm415, %v494, %v498
  %v501 = vshrl.u32 %v393, 16
  %v503 = vrot.slane %v501, 4
  %v504 = vshll.u32 %v393, 16
  %v506 = vrot.slane %v504, 5
  %v507 = vor.u32 %v503, %v506
  %v508 = vrot.slane %v507, 4
  %v510 = vshll.u32 %v394, 16
  %v512 = vrot.slane %v510, 5
  %v513 = vsel %vm415, %v508, %v512
  %v515 = vshrl.u32 %v395, 16
  %v517 = vrot.slane %v515, 4
  %v518 = vshll.u32 %v395, 16
  %v520 = vrot.slane %v518, 5
  %v521 = vor.u32 %v517, %v520
  %v522 = vrot.slane %v521, 4
  %v524 = vshll.u32 %v396, 16
  %v526 = vrot.slane %v524, 5
  %v527 = vsel %vm415, %v522, %v526
  %v529 = vshrl.u32 %v397, 16
  %v531 = vrot.slane %v529, 4
  %v532 = vshll.u32 %v397, 16
  %v534 = vrot.slane %v532, 5
  %v535 = vor.u32 %v531, %v534
  %v536 = vrot.slane %v535, 4
  %v538 = vshll.u32 %v398, 16
  %v540 = vrot.slane %v538, 5
  %v541 = vsel %vm415, %v536, %v540
  %v543 = vshrl.u32 %v399, 16
  %v545 = vrot.slane %v543, 4
  %v546 = vshll.u32 %v399, 16
  %v548 = vrot.slane %v546, 5
  %v549 = vor.u32 %v545, %v548
  %v550 = vrot.slane %v549, 4
  %v552 = vshll.u32 %v400, 16
  %v554 = vrot.slane %v552, 5
  %v555 = vsel %vm415, %v550, %v554
  %v557 = vshrl.u32 %v401, 16
  %v559 = vrot.slane %v557, 4
  %v560 = vshll.u32 %v401, 16
  %v562 = vrot.slane %v560, 5
  %v563 = vor.u32 %v559, %v562
  %v564 = vrot.slane %v563, 4
  %v566 = vshll.u32 %v402, 16
  %v568 = vrot.slane %v566, 5
  %v569 = vsel %vm415, %v564, %v568
  %v571 = vshrl.u32 %v403, 16
  %v573 = vrot.slane %v571, 4
  %v574 = vshll.u32 %v403, 16
  %v576 = vrot.slane %v574, 5
  %v577 = vor.u32 %v573, %v576
  %v578 = vrot.slane %v577, 4
  %v580 = vshll.u32 %v404, 16
  %v582 = vrot.slane %v580, 5
  %v583 = vsel %vm415, %v578, %v582
  %v585 = vshrl.u32 %v405, 16
  %v587 = vrot.slane %v585, 4
  %v588 = vshll.u32 %v405, 16
  %v590 = vrot.slane %v588, 5
  %v591 = vor.u32 %v587, %v590
  %v592 = vrot.slane %v591, 4
  %v594 = vshll.u32 %v406, 16
  %v596 = vrot.slane %v594, 5
  %v597 = vsel %vm415, %v592, %v596
  %v599 = vshrl.u32 %v407, 16
  %v601 = vrot.slane %v599, 4
  %v602 = vshll.u32 %v407, 16
  %v604 = vrot.slane %v602, 5
  %v605 = vor.u32 %v601, %v604
  %v606 = vrot.slane %v605, 4
  %v608 = vshll.u32 %v408, 16
  %v610 = vrot.slane %v608, 5
  %v611 = vsel %vm415, %v606, %v610
  %v613 = vshrl.u32 %v409, 16
  %v615 = vrot.slane %v613, 4
  %v616 = vshll.u32 %v409, 16
  %v618 = vrot.slane %v616, 5
  %v619 = vor.u32 %v615, %v618
  %v620 = vrot.slane %v619, 4
  %v622 = vshll.u32 %v410, 16
  %v624 = vrot.slane %v622, 5
  %v625 = vsel %vm415, %v620, %v624
  %v627 = vshrl.u32 %v411, 16
  %v629 = vrot.slane %v627, 4
  %v630 = vshll.u32 %v411, 16
  %v632 = vrot.slane %v630, 5
  %v633 = vor.u32 %v629, %v632
  %v634 = vrot.slane %v633, 4
  %v636 = vshll.u32 %v412, 16
  %v638 = vrot.slane %v636, 5
  %v639 = vsel %vm415, %v634, %v638
  %s640 = scalar_lea.vmem %s1, 4
  %v641 = vld [vmem:[%s640] sm:$0x3]
  %v642 = vunpack.c.l.b16 %v429
  %v643 = vunpack.c.l.b16 %v443
  %v644 = vunpack.c.l.b16 %v457
  %v645 = vunpack.c.l.b16 %v471
  %v646 = vunpack.c.l.b16 %v485
  %v647 = vunpack.c.l.b16 %v499
  %v648 = vunpack.c.l.b16 %v513
  %v649 = vunpack.c.l.b16 %v527
  %v650 = vunpack.c.l.b16 %v541
  %v651 = vunpack.c.l.b16 %v555
  %v652 = vunpack.c.l.b16 %v569
  %v653 = vunpack.c.l.b16 %v583
  %v654 = vunpack.c.l.b16 %v597
  %v655 = vunpack.c.l.b16 %v611
  %v656 = vunpack.c.l.b16 %v625
  %v657 = vunpack.c.l.b16 %v639
  %v658 = vpack.c.b16 %v643, %v642
  %v659 = vpack.c.b16 %v645, %v644
  %v660 = vpack.c.b16 %v647, %v646
  %v661 = vpack.c.b16 %v649, %v648
  %v662 = vpack.c.b16 %v651, %v650
  %v663 = vpack.c.b16 %v653, %v652
  %v664 = vpack.c.b16 %v655, %v654
  %v665 = vpack.c.b16 %v657, %v656
  %v667 = vsel %vm91, %v658, 0
  %v670 = vsel %vm91, %v659, 0
  %v673 = vsel %vm91, %v660, 0
  %v676 = vsel %vm91, %v661, 0
  %v679 = vsel %vm91, %v662, 0
  %v682 = vsel %vm91, %v663, 0
  %v685 = vsel %vm91, %v664, 0
  %v688 = vsel %vm91, %v665, 0
  %v691 = vsel %vm116, %v641, 0
  %693 = vmatprep.subr.bf16.mxu0 0
  %694 = vmatpush1.bf16.msra.mxu0 0
  %695 = vmatprep.subr.bf16.mxu0 0
  %696 = vmatpush1.bf16.msra.mxu0 0
  %697 = vmatprep.subr.bf16.mxu0 0
  %698 = vmatpush1.bf16.msra.mxu0 0
  %699 = vmatprep.subr.bf16.mxu0 0
  %700 = vmatpush1.bf16.msra.mxu0 0
  %701 = vmatprep.subr.bf16.mxu0 0
  %702 = vmatpush1.bf16.msra.mxu0 0
  %703 = vmatprep.subr.bf16.mxu0 0
  %704 = vmatpush1.bf16.msra.mxu0 0
  %705 = vmatprep.subr.bf16.mxu0 0
  %706 = vmatpush1.bf16.msra.mxu0 0
  %707 = vmatprep.subr.bf16.mxu0 0
  %708 = vmatpush1.bf16.msra.mxu0 %v691
  %709 = vmatprep.subr.bf16.mxu0 0
  %710 = vmatpush2.bf16.msra.mxu0 0
  %711 = vmatprep.subr.bf16.mxu0 0
  %712 = vmatpush2.bf16.msra.mxu0 0
  %713 = vmatprep.subr.bf16.mxu0 0
  %714 = vmatpush2.bf16.msra.mxu0 0
  %715 = vmatprep.subr.bf16.mxu0 0
  %716 = vmatpush2.bf16.msra.mxu0 0
  %717 = vmatprep.subr.bf16.mxu0 0
  %718 = vmatpush2.bf16.msra.mxu0 0
  %719 = vmatprep.subr.bf16.mxu0 0
  %720 = vmatpush2.bf16.msra.mxu0 0
  %721 = vmatprep.subr.bf16.mxu0 0
  %722 = vmatpush2.bf16.msra.mxu0 0
  %723 = vmatprep.subr.bf16.mxu0 0
  %724 = vmatpush2.bf16.msra.mxu0 0
  %725 = vmatprep.mubr.bf16.mxu0 0
  %726 = vmatmul.mubr.bf16.gmra.mxu0 %v667
  %v727 = vpop.f32.mrf.mxu0
  %v728 = vadd.f32 0.0, %v727
  %v729 = vpop.f32.mrf.mxu0
  %v730 = vpop.f32.mrf.mxu0
  %v731 = vadd.f32 0.0, %v730
  %v732 = vpop.f32.mrf.mxu0
  %733 = vmatprep.mubr.bf16.mxu0 0
  %734 = vmatmul.mubr.bf16.gmra.mxu0 %v670
  %v735 = vpop.f32.mrf.mxu0
  %v736 = vadd.f32 0.0, %v735
  %v737 = vpop.f32.mrf.mxu0
  %v738 = vpop.f32.mrf.mxu0
  %v739 = vadd.f32 0.0, %v738
  %v740 = vpop.f32.mrf.mxu0
  %741 = vmatprep.mubr.bf16.mxu0 0
  %742 = vmatmul.mubr.bf16.gmra.mxu0 %v673
  %v743 = vpop.f32.mrf.mxu0
  %v744 = vadd.f32 0.0, %v743
  %v745 = vpop.f32.mrf.mxu0
  %v746 = vpop.f32.mrf.mxu0
  %v747 = vadd.f32 0.0, %v746
  %v748 = vpop.f32.mrf.mxu0
  %749 = vmatprep.mubr.bf16.mxu0 0
  %750 = vmatmul.mubr.bf16.gmra.mxu0 %v676
  %v751 = vpop.f32.mrf.mxu0
  %v752 = vadd.f32 0.0, %v751
  %v753 = vpop.f32.mrf.mxu0
  %v754 = vpop.f32.mrf.mxu0
  %v755 = vadd.f32 0.0, %v754
  %v756 = vpop.f32.mrf.mxu0
  %757 = vmatprep.mubr.bf16.mxu0 0
  %758 = vmatmul.mubr.bf16.gmra.mxu0 %v679
  %v759 = vpop.f32.mrf.mxu0
  %v760 = vadd.f32 0.0, %v759
  %v761 = vpop.f32.mrf.mxu0
  %v762 = vpop.f32.mrf.mxu0
  %v763 = vadd.f32 0.0, %v762
  %v764 = vpop.f32.mrf.mxu0
  %765 = vmatprep.mubr.bf16.mxu0 0
  %766 = vmatmul.mubr.bf16.gmra.mxu0 %v682
  %v767 = vpop.f32.mrf.mxu0
  %v768 = vadd.f32 0.0, %v767
  %v769 = vpop.f32.mrf.mxu0
  %v770 = vpop.f32.mrf.mxu0
  %v771 = vadd.f32 0.0, %v770
  %v772 = vpop.f32.mrf.mxu0
  %773 = vmatprep.mubr.bf16.mxu0 0
  %774 = vmatmul.mubr.bf16.gmra.mxu0 %v685
  %v775 = vpop.f32.mrf.mxu0
  %v776 = vadd.f32 0.0, %v775
  %v777 = vpop.f32.mrf.mxu0
  %v778 = vpop.f32.mrf.mxu0
  %v779 = vadd.f32 0.0, %v778
  %v780 = vpop.f32.mrf.mxu0
  %781 = vmatprep.mubr.bf16.mxu0 0
  %782 = vmatmul.mubr.bf16.gmra.mxu0 %v688
  %v783 = vpop.f32.mrf.mxu0
  %v784 = vadd.f32 0.0, %v783
  %v785 = vpop.f32.mrf.mxu0
  %v786 = vpop.f32.mrf.mxu0
  %v787 = vadd.f32 0.0, %v786
  %v788 = vpop.f32.mrf.mxu0
  %789 = vdwg.mxu0
  %v790 = vadd.f32 %v319, %v728
  %v791 = vadd.f32 %v322, %v731
  %v792 = vadd.f32 %v327, %v736
  %v793 = vadd.f32 %v330, %v739
  %v794 = vadd.f32 %v335, %v744
  %v795 = vadd.f32 %v338, %v747
  %v796 = vadd.f32 %v343, %v752
  %v797 = vadd.f32 %v346, %v755
  %v798 = vadd.f32 %v351, %v760
  %v799 = vadd.f32 %v354, %v763
  %v800 = vadd.f32 %v359, %v768
  %v801 = vadd.f32 %v362, %v771
  %v802 = vadd.f32 %v367, %v776
  %v803 = vadd.f32 %v370, %v779
  %v804 = vadd.f32 %v375, %v784
  %v805 = vadd.f32 %v378, %v787
  %s806 = scalar_lea.vmem %s0, 256
  %v807 = vld [vmem:[%s806] sm:$0xf]
  %v808 = vld [vmem:[%s806 + $0x8] sm:$0xf]
  %v809 = vld [vmem:[%s806 + $0x10] sm:$0xf]
  %v810 = vld [vmem:[%s806 + $0x18] sm:$0xf]
  %v811 = vld [vmem:[%s806 + $0x20] sm:$0xf]
  %v812 = vld [vmem:[%s806 + $0x28] sm:$0xf]
  %v813 = vld [vmem:[%s806 + $0x30] sm:$0xf]
  %v814 = vld [vmem:[%s806 + $0x38] sm:$0xf]
  %v815 = vld [vmem:[%s806 + $0x40] sm:$0xf]
  %v816 = vld [vmem:[%s806 + $0x48] sm:$0xf]
  %v817 = vld [vmem:[%s806 + $0x50] sm:$0xf]
  %v818 = vld [vmem:[%s806 + $0x58] sm:$0xf]
  %v819 = vld [vmem:[%s806 + $0x60] sm:$0xf]
  %v820 = vld [vmem:[%s806 + $0x68] sm:$0xf]
  %v821 = vld [vmem:[%s806 + $0x70] sm:$0xf]
  %v822 = vld [vmem:[%s806 + $0x78] sm:$0xf]
  %s823 = scalar_lea.vmem %s1, 6
  %v824 = vld [vmem:[%s823] sm:$0x3]
  %v841 = vunpack.c.l.b16 %v807
  %v842 = vunpack.c.l.b16 %v808
  %v843 = vunpack.c.l.b16 %v809
  %v844 = vunpack.c.l.b16 %v810
  %v845 = vunpack.c.l.b16 %v811
  %v846 = vunpack.c.l.b16 %v812
  %v847 = vunpack.c.l.b16 %v813
  %v848 = vunpack.c.l.b16 %v814
  %v849 = vunpack.c.l.b16 %v815
  %v850 = vunpack.c.l.b16 %v816
  %v851 = vunpack.c.l.b16 %v817
  %v852 = vunpack.c.l.b16 %v818
  %v853 = vunpack.c.l.b16 %v819
  %v854 = vunpack.c.l.b16 %v820
  %v855 = vunpack.c.l.b16 %v821
  %v856 = vunpack.c.l.b16 %v822
  %v857 = vpack.c.b16 %v842, %v841
  %v858 = vpack.c.b16 %v844, %v843
  %v859 = vpack.c.b16 %v846, %v845
  %v860 = vpack.c.b16 %v848, %v847
  %v861 = vpack.c.b16 %v850, %v849
  %v862 = vpack.c.b16 %v852, %v851
  %v863 = vpack.c.b16 %v854, %v853
  %v864 = vpack.c.b16 %v856, %v855
  %v866 = vsel %vm91, %v857, 0
  %v869 = vsel %vm91, %v858, 0
  %v872 = vsel %vm91, %v859, 0
  %v875 = vsel %vm91, %v860, 0
  %v878 = vsel %vm91, %v861, 0
  %v881 = vsel %vm91, %v862, 0
  %v884 = vsel %vm91, %v863, 0
  %v887 = vsel %vm91, %v864, 0
  %v890 = vsel %vm116, %v824, 0
  %892 = vmatprep.subr.bf16.mxu0 0
  %893 = vmatpush1.bf16.msra.mxu0 0
  %894 = vmatprep.subr.bf16.mxu0 0
  %895 = vmatpush1.bf16.msra.mxu0 0
  %896 = vmatprep.subr.bf16.mxu0 0
  %897 = vmatpush1.bf16.msra.mxu0 0
  %898 = vmatprep.subr.bf16.mxu0 0
  %899 = vmatpush1.bf16.msra.mxu0 0
  %900 = vmatprep.subr.bf16.mxu0 0
  %901 = vmatpush1.bf16.msra.mxu0 0
  %902 = vmatprep.subr.bf16.mxu0 0
  %903 = vmatpush1.bf16.msra.mxu0 0
  %904 = vmatprep.subr.bf16.mxu0 0
  %905 = vmatpush1.bf16.msra.mxu0 0
  %906 = vmatprep.subr.bf16.mxu0 0
  %907 = vmatpush1.bf16.msra.mxu0 %v890
  %908 = vmatprep.subr.bf16.mxu0 0
  %909 = vmatpush2.bf16.msra.mxu0 0
  %910 = vmatprep.subr.bf16.mxu0 0
  %911 = vmatpush2.bf16.msra.mxu0 0
  %912 = vmatprep.subr.bf16.mxu0 0
  %913 = vmatpush2.bf16.msra.mxu0 0
  %914 = vmatprep.subr.bf16.mxu0 0
  %915 = vmatpush2.bf16.msra.mxu0 0
  %916 = vmatprep.subr.bf16.mxu0 0
  %917 = vmatpush2.bf16.msra.mxu0 0
  %918 = vmatprep.subr.bf16.mxu0 0
  %919 = vmatpush2.bf16.msra.mxu0 0
  %920 = vmatprep.subr.bf16.mxu0 0
  %921 = vmatpush2.bf16.msra.mxu0 0
  %922 = vmatprep.subr.bf16.mxu0 0
  %923 = vmatpush2.bf16.msra.mxu0 0
  %924 = vmatprep.mubr.bf16.mxu0 0
  %925 = vmatmul.mubr.bf16.gmra.mxu0 %v866
  %v926 = vpop.f32.mrf.mxu0
  %v927 = vadd.f32 0.0, %v926
  %v928 = vpop.f32.mrf.mxu0
  %v929 = vpop.f32.mrf.mxu0
  %v930 = vadd.f32 0.0, %v929
  %v931 = vpop.f32.mrf.mxu0
  %932 = vmatprep.mubr.bf16.mxu0 0
  %933 = vmatmul.mubr.bf16.gmra.mxu0 %v869
  %v934 = vpop.f32.mrf.mxu0
  %v935 = vadd.f32 0.0, %v934
  %v936 = vpop.f32.mrf.mxu0
  %v937 = vpop.f32.mrf.mxu0
  %v938 = vadd.f32 0.0, %v937
  %v939 = vpop.f32.mrf.mxu0
  %940 = vmatprep.mubr.bf16.mxu0 0
  %941 = vmatmul.mubr.bf16.gmra.mxu0 %v872
  %v942 = vpop.f32.mrf.mxu0
  %v943 = vadd.f32 0.0, %v942
  %v944 = vpop.f32.mrf.mxu0
  %v945 = vpop.f32.mrf.mxu0
  %v946 = vadd.f32 0.0, %v945
  %v947 = vpop.f32.mrf.mxu0
  %948 = vmatprep.mubr.bf16.mxu0 0
  %949 = vmatmul.mubr.bf16.gmra.mxu0 %v875
  %v950 = vpop.f32.mrf.mxu0
  %v951 = vadd.f32 0.0, %v950
  %v952 = vpop.f32.mrf.mxu0
  %v953 = vpop.f32.mrf.mxu0
  %v954 = vadd.f32 0.0, %v953
  %v955 = vpop.f32.mrf.mxu0
  %956 = vmatprep.mubr.bf16.mxu0 0
  %957 = vmatmul.mubr.bf16.gmra.mxu0 %v878
  %v958 = vpop.f32.mrf.mxu0
  %v959 = vadd.f32 0.0, %v958
  %v960 = vpop.f32.mrf.mxu0
  %v961 = vpop.f32.mrf.mxu0
  %v962 = vadd.f32 0.0, %v961
  %v963 = vpop.f32.mrf.mxu0
  %964 = vmatprep.mubr.bf16.mxu0 0
  %965 = vmatmul.mubr.bf16.gmra.mxu0 %v881
  %v966 = vpop.f32.mrf.mxu0
  %v967 = vadd.f32 0.0, %v966
  %v968 = vpop.f32.mrf.mxu0
  %v969 = vpop.f32.mrf.mxu0
  %v970 = vadd.f32 0.0, %v969
  %v971 = vpop.f32.mrf.mxu0
  %972 = vmatprep.mubr.bf16.mxu0 0
  %973 = vmatmul.mubr.bf16.gmra.mxu0 %v884
  %v974 = vpop.f32.mrf.mxu0
  %v975 = vadd.f32 0.0, %v974
  %v976 = vpop.f32.mrf.mxu0
  %v977 = vpop.f32.mrf.mxu0
  %v978 = vadd.f32 0.0, %v977
  %v979 = vpop.f32.mrf.mxu0
  %980 = vmatprep.mubr.bf16.mxu0 0
  %981 = vmatmul.mubr.bf16.gmra.mxu0 %v887
  %v982 = vpop.f32.mrf.mxu0
  %v983 = vadd.f32 0.0, %v982
  %v984 = vpop.f32.mrf.mxu0
  %v985 = vpop.f32.mrf.mxu0
  %v986 = vadd.f32 0.0, %v985
  %v987 = vpop.f32.mrf.mxu0
  %988 = vdwg.mxu0
  %v989 = vadd.f32 %v790, %v927
  %v990 = vadd.f32 %v791, %v930
  %v991 = vadd.f32 %v792, %v935
  %v992 = vadd.f32 %v793, %v938
  %v993 = vadd.f32 %v794, %v943
  %v994 = vadd.f32 %v795, %v946
  %v995 = vadd.f32 %v796, %v951
  %v996 = vadd.f32 %v797, %v954
  %v997 = vadd.f32 %v798, %v959
  %v998 = vadd.f32 %v799, %v962
  %v999 = vadd.f32 %v800, %v967
  %v1000 = vadd.f32 %v801, %v970
  %v1001 = vadd.f32 %v802, %v975
  %v1002 = vadd.f32 %v803, %v978
  %v1003 = vadd.f32 %v804, %v983
  %v1004 = vadd.f32 %v805, %v986
  %s1005 = scalar_lea.vmem %s0, 384
  %v1006 = vld [vmem:[%s1005] sm:$0xf]
  %v1007 = vld [vmem:[%s1005 + $0x8] sm:$0xf]
  %v1008 = vld [vmem:[%s1005 + $0x10] sm:$0xf]
  %v1009 = vld [vmem:[%s1005 + $0x18] sm:$0xf]
  %v1010 = vld [vmem:[%s1005 + $0x20] sm:$0xf]
  %v1011 = vld [vmem:[%s1005 + $0x28] sm:$0xf]
  %v1012 = vld [vmem:[%s1005 + $0x30] sm:$0xf]
  %v1013 = vld [vmem:[%s1005 + $0x38] sm:$0xf]
  %v1014 = vld [vmem:[%s1005 + $0x40] sm:$0xf]
  %v1015 = vld [vmem:[%s1005 + $0x48] sm:$0xf]
  %v1016 = vld [vmem:[%s1005 + $0x50] sm:$0xf]
  %v1017 = vld [vmem:[%s1005 + $0x58] sm:$0xf]
  %v1018 = vld [vmem:[%s1005 + $0x60] sm:$0xf]
  %v1019 = vld [vmem:[%s1005 + $0x68] sm:$0xf]
  %v1020 = vld [vmem:[%s1005 + $0x70] sm:$0xf]
  %v1021 = vld [vmem:[%s1005 + $0x78] sm:$0xf]
  %s1022 = scalar_lea.vmem %s1, 8
  %v1023 = vld [vmem:[%s1022] sm:$0x3]
  %v1040 = vunpack.c.l.b16 %v1006
  %v1041 = vunpack.c.l.b16 %v1007
  %v1042 = vunpack.c.l.b16 %v1008
  %v1043 = vunpack.c.l.b16 %v1009
  %v1044 = vunpack.c.l.b16 %v1010
  %v1045 = vunpack.c.l.b16 %v1011
  %v1046 = vunpack.c.l.b16 %v1012
  %v1047 = vunpack.c.l.b16 %v1013
  %v1048 = vunpack.c.l.b16 %v1014
  %v1049 = vunpack.c.l.b16 %v1015
  %v1050 = vunpack.c.l.b16 %v1016
  %v1051 = vunpack.c.l.b16 %v1017
  %v1052 = vunpack.c.l.b16 %v1018
  %v1053 = vunpack.c.l.b16 %v1019
  %v1054 = vunpack.c.l.b16 %v1020
  %v1055 = vunpack.c.l.b16 %v1021
  %v1056 = vpack.c.b16 %v1041, %v1040
  %v1057 = vpack.c.b16 %v1043, %v1042
  %v1058 = vpack.c.b16 %v1045, %v1044
  %v1059 = vpack.c.b16 %v1047, %v1046
  %v1060 = vpack.c.b16 %v1049, %v1048
  %v1061 = vpack.c.b16 %v1051, %v1050
  %v1062 = vpack.c.b16 %v1053, %v1052
  %v1063 = vpack.c.b16 %v1055, %v1054
  %v1065 = vsel %vm91, %v1056, 0
  %v1068 = vsel %vm91, %v1057, 0
  %v1071 = vsel %vm91, %v1058, 0
  %v1074 = vsel %vm91, %v1059, 0
  %v1077 = vsel %vm91, %v1060, 0
  %v1080 = vsel %vm91, %v1061, 0
  %v1083 = vsel %vm91, %v1062, 0
  %v1086 = vsel %vm91, %v1063, 0
  %v1089 = vsel %vm116, %v1023, 0
  %1091 = vmatprep.subr.bf16.mxu0 0
  %1092 = vmatpush1.bf16.msra.mxu0 0
  %1093 = vmatprep.subr.bf16.mxu0 0
  %1094 = vmatpush1.bf16.msra.mxu0 0
  %1095 = vmatprep.subr.bf16.mxu0 0
  %1096 = vmatpush1.bf16.msra.mxu0 0
  %1097 = vmatprep.subr.bf16.mxu0 0
  %1098 = vmatpush1.bf16.msra.mxu0 0
  %1099 = vmatprep.subr.bf16.mxu0 0
  %1100 = vmatpush1.bf16.msra.mxu0 0
  %1101 = vmatprep.subr.bf16.mxu0 0
  %1102 = vmatpush1.bf16.msra.mxu0 0
  %1103 = vmatprep.subr.bf16.mxu0 0
  %1104 = vmatpush1.bf16.msra.mxu0 0
  %1105 = vmatprep.subr.bf16.mxu0 0
  %1106 = vmatpush1.bf16.msra.mxu0 %v1089
  %1107 = vmatprep.subr.bf16.mxu0 0
  %1108 = vmatpush2.bf16.msra.mxu0 0
  %1109 = vmatprep.subr.bf16.mxu0 0
  %1110 = vmatpush2.bf16.msra.mxu0 0
  %1111 = vmatprep.subr.bf16.mxu0 0
  %1112 = vmatpush2.bf16.msra.mxu0 0
  %1113 = vmatprep.subr.bf16.mxu0 0
  %1114 = vmatpush2.bf16.msra.mxu0 0
  %1115 = vmatprep.subr.bf16.mxu0 0
  %1116 = vmatpush2.bf16.msra.mxu0 0
  %1117 = vmatprep.subr.bf16.mxu0 0
  %1118 = vmatpush2.bf16.msra.mxu0 0
  %1119 = vmatprep.subr.bf16.mxu0 0
  %1120 = vmatpush2.bf16.msra.mxu0 0
  %1121 = vmatprep.subr.bf16.mxu0 0
  %1122 = vmatpush2.bf16.msra.mxu0 0
  %1123 = vmatprep.mubr.bf16.mxu0 0
  %1124 = vmatmul.mubr.bf16.gmra.mxu0 %v1065
  %v1125 = vpop.f32.mrf.mxu0
  %v1126 = vadd.f32 0.0, %v1125
  %v1127 = vpop.f32.mrf.mxu0
  %v1128 = vpop.f32.mrf.mxu0
  %v1129 = vadd.f32 0.0, %v1128
  %v1130 = vpop.f32.mrf.mxu0
  %1131 = vmatprep.mubr.bf16.mxu0 0
  %1132 = vmatmul.mubr.bf16.gmra.mxu0 %v1068
  %v1133 = vpop.f32.mrf.mxu0
  %v1134 = vadd.f32 0.0, %v1133
  %v1135 = vpop.f32.mrf.mxu0
  %v1136 = vpop.f32.mrf.mxu0
  %v1137 = vadd.f32 0.0, %v1136
  %v1138 = vpop.f32.mrf.mxu0
  %1139 = vmatprep.mubr.bf16.mxu0 0
  %1140 = vmatmul.mubr.bf16.gmra.mxu0 %v1071
  %v1141 = vpop.f32.mrf.mxu0
  %v1142 = vadd.f32 0.0, %v1141
  %v1143 = vpop.f32.mrf.mxu0
  %v1144 = vpop.f32.mrf.mxu0
  %v1145 = vadd.f32 0.0, %v1144
  %v1146 = vpop.f32.mrf.mxu0
  %1147 = vmatprep.mubr.bf16.mxu0 0
  %1148 = vmatmul.mubr.bf16.gmra.mxu0 %v1074
  %v1149 = vpop.f32.mrf.mxu0
  %v1150 = vadd.f32 0.0, %v1149
  %v1151 = vpop.f32.mrf.mxu0
  %v1152 = vpop.f32.mrf.mxu0
  %v1153 = vadd.f32 0.0, %v1152
  %v1154 = vpop.f32.mrf.mxu0
  %1155 = vmatprep.mubr.bf16.mxu0 0
  %1156 = vmatmul.mubr.bf16.gmra.mxu0 %v1077
  %v1157 = vpop.f32.mrf.mxu0
  %v1158 = vadd.f32 0.0, %v1157
  %v1159 = vpop.f32.mrf.mxu0
  %v1160 = vpop.f32.mrf.mxu0
  %v1161 = vadd.f32 0.0, %v1160
  %v1162 = vpop.f32.mrf.mxu0
  %1163 = vmatprep.mubr.bf16.mxu0 0
  %1164 = vmatmul.mubr.bf16.gmra.mxu0 %v1080
  %v1165 = vpop.f32.mrf.mxu0
  %v1166 = vadd.f32 0.0, %v1165
  %v1167 = vpop.f32.mrf.mxu0
  %v1168 = vpop.f32.mrf.mxu0
  %v1169 = vadd.f32 0.0, %v1168
  %v1170 = vpop.f32.mrf.mxu0
  %1171 = vmatprep.mubr.bf16.mxu0 0
  %1172 = vmatmul.mubr.bf16.gmra.mxu0 %v1083
  %v1173 = vpop.f32.mrf.mxu0
  %v1174 = vadd.f32 0.0, %v1173
  %v1175 = vpop.f32.mrf.mxu0
  %v1176 = vpop.f32.mrf.mxu0
  %v1177 = vadd.f32 0.0, %v1176
  %v1178 = vpop.f32.mrf.mxu0
  %1179 = vmatprep.mubr.bf16.mxu0 0
  %1180 = vmatmul.mubr.bf16.gmra.mxu0 %v1086
  %v1181 = vpop.f32.mrf.mxu0
  %v1182 = vadd.f32 0.0, %v1181
  %v1183 = vpop.f32.mrf.mxu0
  %v1184 = vpop.f32.mrf.mxu0
  %v1185 = vadd.f32 0.0, %v1184
  %v1186 = vpop.f32.mrf.mxu0
  %1187 = vdwg.mxu0
  %v1188 = vadd.f32 %v989, %v1126
  %v1189 = vadd.f32 %v990, %v1129
  %v1190 = vadd.f32 %v991, %v1134
  %v1191 = vadd.f32 %v992, %v1137
  %v1192 = vadd.f32 %v993, %v1142
  %v1193 = vadd.f32 %v994, %v1145
  %v1194 = vadd.f32 %v995, %v1150
  %v1195 = vadd.f32 %v996, %v1153
  %v1196 = vadd.f32 %v997, %v1158
  %v1197 = vadd.f32 %v998, %v1161
  %v1198 = vadd.f32 %v999, %v1166
  %v1199 = vadd.f32 %v1000, %v1169
  %v1200 = vadd.f32 %v1001, %v1174
  %v1201 = vadd.f32 %v1002, %v1177
  %v1202 = vadd.f32 %v1003, %v1182
  %v1203 = vadd.f32 %v1004, %v1185
  %v1204 = vld [vmem:[%s806] sm:$0xf]
  %v1205 = vld [vmem:[%s806 + $0x4] sm:$0x1]
  %v1206 = vld [vmem:[%s806 + $0x8] sm:$0xf]
  %v1207 = vld [vmem:[%s806 + $0xc] sm:$0x1]
  %v1208 = vld [vmem:[%s806 + $0x10] sm:$0xf]
  %v1209 = vld [vmem:[%s806 + $0x14] sm:$0x1]
  %v1210 = vld [vmem:[%s806 + $0x18] sm:$0xf]
  %v1211 = vld [vmem:[%s806 + $0x1c] sm:$0x1]
  %v1212 = vld [vmem:[%s806 + $0x20] sm:$0xf]
  %v1213 = vld [vmem:[%s806 + $0x24] sm:$0x1]
  %v1214 = vld [vmem:[%s806 + $0x28] sm:$0xf]
  %v1215 = vld [vmem:[%s806 + $0x2c] sm:$0x1]
  %v1216 = vld [vmem:[%s806 + $0x30] sm:$0xf]
  %v1217 = vld [vmem:[%s806 + $0x34] sm:$0x1]
  %v1218 = vld [vmem:[%s806 + $0x38] sm:$0xf]
  %v1219 = vld [vmem:[%s806 + $0x3c] sm:$0x1]
  %v1220 = vld [vmem:[%s806 + $0x40] sm:$0xf]
  %v1221 = vld [vmem:[%s806 + $0x44] sm:$0x1]
  %v1222 = vld [vmem:[%s806 + $0x48] sm:$0xf]
  %v1223 = vld [vmem:[%s806 + $0x4c] sm:$0x1]
  %v1224 = vld [vmem:[%s806 + $0x50] sm:$0xf]
  %v1225 = vld [vmem:[%s806 + $0x54] sm:$0x1]
  %v1226 = vld [vmem:[%s806 + $0x58] sm:$0xf]
  %v1227 = vld [vmem:[%s806 + $0x5c] sm:$0x1]
  %v1228 = vld [vmem:[%s806 + $0x60] sm:$0xf]
  %v1229 = vld [vmem:[%s806 + $0x64] sm:$0x1]
  %v1230 = vld [vmem:[%s806 + $0x68] sm:$0xf]
  %v1231 = vld [vmem:[%s806 + $0x6c] sm:$0x1]
  %v1232 = vld [vmem:[%s806 + $0x70] sm:$0xf]
  %v1233 = vld [vmem:[%s806 + $0x74] sm:$0x1]
  %v1234 = vld [vmem:[%s806 + $0x78] sm:$0xf]
  %v1235 = vld [vmem:[%s806 + $0x7c] sm:$0x1]
  %v1237 = vshrl.u32 %v1204, 16
  %v1239 = vrot.slane %v1237, 4
  %v1240 = vshll.u32 %v1204, 16
  %v1242 = vrot.slane %v1240, 5
  %v1243 = vor.u32 %v1239, %v1242
  %v1244 = vrot.slane %v1243, 4
  %v1246 = vshll.u32 %v1205, 16
  %v1248 = vrot.slane %v1246, 5
  %v1249 = vsel %vm415, %v1244, %v1248
  %v1251 = vshrl.u32 %v1206, 16
  %v1253 = vrot.slane %v1251, 4
  %v1254 = vshll.u32 %v1206, 16
  %v1256 = vrot.slane %v1254, 5
  %v1257 = vor.u32 %v1253, %v1256
  %v1258 = vrot.slane %v1257, 4
  %v1260 = vshll.u32 %v1207, 16
  %v1262 = vrot.slane %v1260, 5
  %v1263 = vsel %vm415, %v1258, %v1262
  %v1265 = vshrl.u32 %v1208, 16
  %v1267 = vrot.slane %v1265, 4
  %v1268 = vshll.u32 %v1208, 16
  %v1270 = vrot.slane %v1268, 5
  %v1271 = vor.u32 %v1267, %v1270
  %v1272 = vrot.slane %v1271, 4
  %v1274 = vshll.u32 %v1209, 16
  %v1276 = vrot.slane %v1274, 5
  %v1277 = vsel %vm415, %v1272, %v1276
  %v1279 = vshrl.u32 %v1210, 16
  %v1281 = vrot.slane %v1279, 4
  %v1282 = vshll.u32 %v1210, 16
  %v1284 = vrot.slane %v1282, 5
  %v1285 = vor.u32 %v1281, %v1284
  %v1286 = vrot.slane %v1285, 4
  %v1288 = vshll.u32 %v1211, 16
  %v1290 = vrot.slane %v1288, 5
  %v1291 = vsel %vm415, %v1286, %v1290
  %v1293 = vshrl.u32 %v1212, 16
  %v1295 = vrot.slane %v1293, 4
  %v1296 = vshll.u32 %v1212, 16
  %v1298 = vrot.slane %v1296, 5
  %v1299 = vor.u32 %v1295, %v1298
  %v1300 = vrot.slane %v1299, 4
  %v1302 = vshll.u32 %v1213, 16
  %v1304 = vrot.slane %v1302, 5
  %v1305 = vsel %vm415, %v1300, %v1304
  %v1307 = vshrl.u32 %v1214, 16
  %v1309 = vrot.slane %v1307, 4
  %v1310 = vshll.u32 %v1214, 16
  %v1312 = vrot.slane %v1310, 5
  %v1313 = vor.u32 %v1309, %v1312
  %v1314 = vrot.slane %v1313, 4
  %v1316 = vshll.u32 %v1215, 16
  %v1318 = vrot.slane %v1316, 5
  %v1319 = vsel %vm415, %v1314, %v1318
  %v1321 = vshrl.u32 %v1216, 16
  %v1323 = vrot.slane %v1321, 4
  %v1324 = vshll.u32 %v1216, 16
  %v1326 = vrot.slane %v1324, 5
  %v1327 = vor.u32 %v1323, %v1326
  %v1328 = vrot.slane %v1327, 4
  %v1330 = vshll.u32 %v1217, 16
  %v1332 = vrot.slane %v1330, 5
  %v1333 = vsel %vm415, %v1328, %v1332
  %v1335 = vshrl.u32 %v1218, 16
  %v1337 = vrot.slane %v1335, 4
  %v1338 = vshll.u32 %v1218, 16
  %v1340 = vrot.slane %v1338, 5
  %v1341 = vor.u32 %v1337, %v1340
  %v1342 = vrot.slane %v1341, 4
  %v1344 = vshll.u32 %v1219, 16
  %v1346 = vrot.slane %v1344, 5
  %v1347 = vsel %vm415, %v1342, %v1346
  %v1349 = vshrl.u32 %v1220, 16
  %v1351 = vrot.slane %v1349, 4
  %v1352 = vshll.u32 %v1220, 16
  %v1354 = vrot.slane %v1352, 5
  %v1355 = vor.u32 %v1351, %v1354
  %v1356 = vrot.slane %v1355, 4
  %v1358 = vshll.u32 %v1221, 16
  %v1360 = vrot.slane %v1358, 5
  %v1361 = vsel %vm415, %v1356, %v1360
  %v1363 = vshrl.u32 %v1222, 16
  %v1365 = vrot.slane %v1363, 4
  %v1366 = vshll.u32 %v1222, 16
  %v1368 = vrot.slane %v1366, 5
  %v1369 = vor.u32 %v1365, %v1368
  %v1370 = vrot.slane %v1369, 4
  %v1372 = vshll.u32 %v1223, 16
  %v1374 = vrot.slane %v1372, 5
  %v1375 = vsel %vm415, %v1370, %v1374
  %v1377 = vshrl.u32 %v1224, 16
  %v1379 = vrot.slane %v1377, 4
  %v1380 = vshll.u32 %v1224, 16
  %v1382 = vrot.slane %v1380, 5
  %v1383 = vor.u32 %v1379, %v1382
  %v1384 = vrot.slane %v1383, 4
  %v1386 = vshll.u32 %v1225, 16
  %v1388 = vrot.slane %v1386, 5
  %v1389 = vsel %vm415, %v1384, %v1388
  %v1391 = vshrl.u32 %v1226, 16
  %v1393 = vrot.slane %v1391, 4
  %v1394 = vshll.u32 %v1226, 16
  %v1396 = vrot.slane %v1394, 5
  %v1397 = vor.u32 %v1393, %v1396
  %v1398 = vrot.slane %v1397, 4
  %v1400 = vshll.u32 %v1227, 16
  %v1402 = vrot.slane %v1400, 5
  %v1403 = vsel %vm415, %v1398, %v1402
  %v1405 = vshrl.u32 %v1228, 16
  %v1407 = vrot.slane %v1405, 4
  %v1408 = vshll.u32 %v1228, 16
  %v1410 = vrot.slane %v1408, 5
  %v1411 = vor.u32 %v1407, %v1410
  %v1412 = vrot.slane %v1411, 4
  %v1414 = vshll.u32 %v1229, 16
  %v1416 = vrot.slane %v1414, 5
  %v1417 = vsel %vm415, %v1412, %v1416
  %v1419 = vshrl.u32 %v1230, 16
  %v1421 = vrot.slane %v1419, 4
  %v1422 = vshll.u32 %v1230, 16
  %v1424 = vrot.slane %v1422, 5
  %v1425 = vor.u32 %v1421, %v1424
  %v1426 = vrot.slane %v1425, 4
  %v1428 = vshll.u32 %v1231, 16
  %v1430 = vrot.slane %v1428, 5
  %v1431 = vsel %vm415, %v1426, %v1430
  %v1433 = vshrl.u32 %v1232, 16
  %v1435 = vrot.slane %v1433, 4
  %v1436 = vshll.u32 %v1232, 16
  %v1438 = vrot.slane %v1436, 5
  %v1439 = vor.u32 %v1435, %v1438
  %v1440 = vrot.slane %v1439, 4
  %v1442 = vshll.u32 %v1233, 16
  %v1444 = vrot.slane %v1442, 5
  %v1445 = vsel %vm415, %v1440, %v1444
  %v1447 = vshrl.u32 %v1234, 16
  %v1449 = vrot.slane %v1447, 4
  %v1450 = vshll.u32 %v1234, 16
  %v1452 = vrot.slane %v1450, 5
  %v1453 = vor.u32 %v1449, %v1452
  %v1454 = vrot.slane %v1453, 4
  %v1456 = vshll.u32 %v1235, 16
  %v1458 = vrot.slane %v1456, 5
  %v1459 = vsel %vm415, %v1454, %v1458
  %s1460 = scalar_lea.vmem %s1, 10
  %v1461 = vld [vmem:[%s1460] sm:$0x3]
  %v1462 = vunpack.c.l.b16 %v1249
  %v1463 = vunpack.c.l.b16 %v1263
  %v1464 = vunpack.c.l.b16 %v1277
  %v1465 = vunpack.c.l.b16 %v1291
  %v1466 = vunpack.c.l.b16 %v1305
  %v1467 = vunpack.c.l.b16 %v1319
  %v1468 = vunpack.c.l.b16 %v1333
  %v1469 = vunpack.c.l.b16 %v1347
  %v1470 = vunpack.c.l.b16 %v1361
  %v1471 = vunpack.c.l.b16 %v1375
  %v1472 = vunpack.c.l.b16 %v1389
  %v1473 = vunpack.c.l.b16 %v1403
  %v1474 = vunpack.c.l.b16 %v1417
  %v1475 = vunpack.c.l.b16 %v1431
  %v1476 = vunpack.c.l.b16 %v1445
  %v1477 = vunpack.c.l.b16 %v1459
  %v1478 = vpack.c.b16 %v1463, %v1462
  %v1479 = vpack.c.b16 %v1465, %v1464
  %v1480 = vpack.c.b16 %v1467, %v1466
  %v1481 = vpack.c.b16 %v1469, %v1468
  %v1482 = vpack.c.b16 %v1471, %v1470
  %v1483 = vpack.c.b16 %v1473, %v1472
  %v1484 = vpack.c.b16 %v1475, %v1474
  %v1485 = vpack.c.b16 %v1477, %v1476
  %v1487 = vsel %vm91, %v1478, 0
  %v1490 = vsel %vm91, %v1479, 0
  %v1493 = vsel %vm91, %v1480, 0
  %v1496 = vsel %vm91, %v1481, 0
  %v1499 = vsel %vm91, %v1482, 0
  %v1502 = vsel %vm91, %v1483, 0
  %v1505 = vsel %vm91, %v1484, 0
  %v1508 = vsel %vm91, %v1485, 0
  %v1511 = vsel %vm116, %v1461, 0
  %1513 = vmatprep.subr.bf16.mxu0 0
  %1514 = vmatpush1.bf16.msra.mxu0 0
  %1515 = vmatprep.subr.bf16.mxu0 0
  %1516 = vmatpush1.bf16.msra.mxu0 0
  %1517 = vmatprep.subr.bf16.mxu0 0
  %1518 = vmatpush1.bf16.msra.mxu0 0
  %1519 = vmatprep.subr.bf16.mxu0 0
  %1520 = vmatpush1.bf16.msra.mxu0 0
  %1521 = vmatprep.subr.bf16.mxu0 0
  %1522 = vmatpush1.bf16.msra.mxu0 0
  %1523 = vmatprep.subr.bf16.mxu0 0
  %1524 = vmatpush1.bf16.msra.mxu0 0
  %1525 = vmatprep.subr.bf16.mxu0 0
  %1526 = vmatpush1.bf16.msra.mxu0 0
  %1527 = vmatprep.subr.bf16.mxu0 0
  %1528 = vmatpush1.bf16.msra.mxu0 %v1511
  %1529 = vmatprep.subr.bf16.mxu0 0
  %1530 = vmatpush2.bf16.msra.mxu0 0
  %1531 = vmatprep.subr.bf16.mxu0 0
  %1532 = vmatpush2.bf16.msra.mxu0 0
  %1533 = vmatprep.subr.bf16.mxu0 0
  %1534 = vmatpush2.bf16.msra.mxu0 0
  %1535 = vmatprep.subr.bf16.mxu0 0
  %1536 = vmatpush2.bf16.msra.mxu0 0
  %1537 = vmatprep.subr.bf16.mxu0 0
  %1538 = vmatpush2.bf16.msra.mxu0 0
  %1539 = vmatprep.subr.bf16.mxu0 0
  %1540 = vmatpush2.bf16.msra.mxu0 0
  %1541 = vmatprep.subr.bf16.mxu0 0
  %1542 = vmatpush2.bf16.msra.mxu0 0
  %1543 = vmatprep.subr.bf16.mxu0 0
  %1544 = vmatpush2.bf16.msra.mxu0 0
  %1545 = vmatprep.mubr.bf16.mxu0 0
  %1546 = vmatmul.mubr.bf16.gmra.mxu0 %v1487
  %v1547 = vpop.f32.mrf.mxu0
  %v1548 = vadd.f32 0.0, %v1547
  %v1549 = vpop.f32.mrf.mxu0
  %v1550 = vpop.f32.mrf.mxu0
  %v1551 = vadd.f32 0.0, %v1550
  %v1552 = vpop.f32.mrf.mxu0
  %1553 = vmatprep.mubr.bf16.mxu0 0
  %1554 = vmatmul.mubr.bf16.gmra.mxu0 %v1490
  %v1555 = vpop.f32.mrf.mxu0
  %v1556 = vadd.f32 0.0, %v1555
  %v1557 = vpop.f32.mrf.mxu0
  %v1558 = vpop.f32.mrf.mxu0
  %v1559 = vadd.f32 0.0, %v1558
  %v1560 = vpop.f32.mrf.mxu0
  %1561 = vmatprep.mubr.bf16.mxu0 0
  %1562 = vmatmul.mubr.bf16.gmra.mxu0 %v1493
  %v1563 = vpop.f32.mrf.mxu0
  %v1564 = vadd.f32 0.0, %v1563
  %v1565 = vpop.f32.mrf.mxu0
  %v1566 = vpop.f32.mrf.mxu0
  %v1567 = vadd.f32 0.0, %v1566
  %v1568 = vpop.f32.mrf.mxu0
  %1569 = vmatprep.mubr.bf16.mxu0 0
  %1570 = vmatmul.mubr.bf16.gmra.mxu0 %v1496
  %v1571 = vpop.f32.mrf.mxu0
  %v1572 = vadd.f32 0.0, %v1571
  %v1573 = vpop.f32.mrf.mxu0
  %v1574 = vpop.f32.mrf.mxu0
  %v1575 = vadd.f32 0.0, %v1574
  %v1576 = vpop.f32.mrf.mxu0
  %1577 = vmatprep.mubr.bf16.mxu0 0
  %1578 = vmatmul.mubr.bf16.gmra.mxu0 %v1499
  %v1579 = vpop.f32.mrf.mxu0
  %v1580 = vadd.f32 0.0, %v1579
  %v1581 = vpop.f32.mrf.mxu0
  %v1582 = vpop.f32.mrf.mxu0
  %v1583 = vadd.f32 0.0, %v1582
  %v1584 = vpop.f32.mrf.mxu0
  %1585 = vmatprep.mubr.bf16.mxu0 0
  %1586 = vmatmul.mubr.bf16.gmra.mxu0 %v1502
  %v1587 = vpop.f32.mrf.mxu0
  %v1588 = vadd.f32 0.0, %v1587
  %v1589 = vpop.f32.mrf.mxu0
  %v1590 = vpop.f32.mrf.mxu0
  %v1591 = vadd.f32 0.0, %v1590
  %v1592 = vpop.f32.mrf.mxu0
  %1593 = vmatprep.mubr.bf16.mxu0 0
  %1594 = vmatmul.mubr.bf16.gmra.mxu0 %v1505
  %v1595 = vpop.f32.mrf.mxu0
  %v1596 = vadd.f32 0.0, %v1595
  %v1597 = vpop.f32.mrf.mxu0
  %v1598 = vpop.f32.mrf.mxu0
  %v1599 = vadd.f32 0.0, %v1598
  %v1600 = vpop.f32.mrf.mxu0
  %1601 = vmatprep.mubr.bf16.mxu0 0
  %1602 = vmatmul.mubr.bf16.gmra.mxu0 %v1508
  %v1603 = vpop.f32.mrf.mxu0
  %v1604 = vadd.f32 0.0, %v1603
  %v1605 = vpop.f32.mrf.mxu0
  %v1606 = vpop.f32.mrf.mxu0
  %v1607 = vadd.f32 0.0, %v1606
  %v1608 = vpop.f32.mrf.mxu0
  %1609 = vdwg.mxu0
  %v1610 = vadd.f32 %v1188, %v1548
  %v1611 = vadd.f32 %v1189, %v1551
  %v1612 = vadd.f32 %v1190, %v1556
  %v1613 = vadd.f32 %v1191, %v1559
  %v1614 = vadd.f32 %v1192, %v1564
  %v1615 = vadd.f32 %v1193, %v1567
  %v1616 = vadd.f32 %v1194, %v1572
  %v1617 = vadd.f32 %v1195, %v1575
  %v1618 = vadd.f32 %v1196, %v1580
  %v1619 = vadd.f32 %v1197, %v1583
  %v1620 = vadd.f32 %v1198, %v1588
  %v1621 = vadd.f32 %v1199, %v1591
  %v1622 = vadd.f32 %v1200, %v1596
  %v1623 = vadd.f32 %v1201, %v1599
  %v1624 = vadd.f32 %v1202, %v1604
  %v1625 = vadd.f32 %v1203, %v1607
  %s1626 = scalar_lea.vmem %s0, 512
  %v1627 = vld [vmem:[%s1626] sm:$0xf]
  %v1628 = vld [vmem:[%s1626 + $0x8] sm:$0xf]
  %v1629 = vld [vmem:[%s1626 + $0x10] sm:$0xf]
  %v1630 = vld [vmem:[%s1626 + $0x18] sm:$0xf]
  %v1631 = vld [vmem:[%s1626 + $0x20] sm:$0xf]
  %v1632 = vld [vmem:[%s1626 + $0x28] sm:$0xf]
  %v1633 = vld [vmem:[%s1626 + $0x30] sm:$0xf]
  %v1634 = vld [vmem:[%s1626 + $0x38] sm:$0xf]
  %v1635 = vld [vmem:[%s1626 + $0x40] sm:$0xf]
  %v1636 = vld [vmem:[%s1626 + $0x48] sm:$0xf]
  %v1637 = vld [vmem:[%s1626 + $0x50] sm:$0xf]
  %v1638 = vld [vmem:[%s1626 + $0x58] sm:$0xf]
  %v1639 = vld [vmem:[%s1626 + $0x60] sm:$0xf]
  %v1640 = vld [vmem:[%s1626 + $0x68] sm:$0xf]
  %v1641 = vld [vmem:[%s1626 + $0x70] sm:$0xf]
  %v1642 = vld [vmem:[%s1626 + $0x78] sm:$0xf]
  %s1643 = scalar_lea.vmem %s1, 12
  %v1644 = vld [vmem:[%s1643] sm:$0x3]
  %v1661 = vunpack.c.l.b16 %v1627
  %v1662 = vunpack.c.l.b16 %v1628
  %v1663 = vunpack.c.l.b16 %v1629
  %v1664 = vunpack.c.l.b16 %v1630
  %v1665 = vunpack.c.l.b16 %v1631
  %v1666 = vunpack.c.l.b16 %v1632
  %v1667 = vunpack.c.l.b16 %v1633
  %v1668 = vunpack.c.l.b16 %v1634
  %v1669 = vunpack.c.l.b16 %v1635
  %v1670 = vunpack.c.l.b16 %v1636
  %v1671 = vunpack.c.l.b16 %v1637
  %v1672 = vunpack.c.l.b16 %v1638
  %v1673 = vunpack.c.l.b16 %v1639
  %v1674 = vunpack.c.l.b16 %v1640
  %v1675 = vunpack.c.l.b16 %v1641
  %v1676 = vunpack.c.l.b16 %v1642
  %v1677 = vpack.c.b16 %v1662, %v1661
  %v1678 = vpack.c.b16 %v1664, %v1663
  %v1679 = vpack.c.b16 %v1666, %v1665
  %v1680 = vpack.c.b16 %v1668, %v1667
  %v1681 = vpack.c.b16 %v1670, %v1669
  %v1682 = vpack.c.b16 %v1672, %v1671
  %v1683 = vpack.c.b16 %v1674, %v1673
  %v1684 = vpack.c.b16 %v1676, %v1675
  %v1686 = vsel %vm91, %v1677, 0
  %v1689 = vsel %vm91, %v1678, 0
  %v1692 = vsel %vm91, %v1679, 0
  %v1695 = vsel %vm91, %v1680, 0
  %v1698 = vsel %vm91, %v1681, 0
  %v1701 = vsel %vm91, %v1682, 0
  %v1704 = vsel %vm91, %v1683, 0
  %v1707 = vsel %vm91, %v1684, 0
  %v1710 = vsel %vm116, %v1644, 0
  %1712 = vmatprep.subr.bf16.mxu0 0
  %1713 = vmatpush1.bf16.msra.mxu0 0
  %1714 = vmatprep.subr.bf16.mxu0 0
  %1715 = vmatpush1.bf16.msra.mxu0 0
  %1716 = vmatprep.subr.bf16.mxu0 0
  %1717 = vmatpush1.bf16.msra.mxu0 0
  %1718 = vmatprep.subr.bf16.mxu0 0
  %1719 = vmatpush1.bf16.msra.mxu0 0
  %1720 = vmatprep.subr.bf16.mxu0 0
  %1721 = vmatpush1.bf16.msra.mxu0 0
  %1722 = vmatprep.subr.bf16.mxu0 0
  %1723 = vmatpush1.bf16.msra.mxu0 0
  %1724 = vmatprep.subr.bf16.mxu0 0
  %1725 = vmatpush1.bf16.msra.mxu0 0
  %1726 = vmatprep.subr.bf16.mxu0 0
  %1727 = vmatpush1.bf16.msra.mxu0 %v1710
  %1728 = vmatprep.subr.bf16.mxu0 0
  %1729 = vmatpush2.bf16.msra.mxu0 0
  %1730 = vmatprep.subr.bf16.mxu0 0
  %1731 = vmatpush2.bf16.msra.mxu0 0
  %1732 = vmatprep.subr.bf16.mxu0 0
  %1733 = vmatpush2.bf16.msra.mxu0 0
  %1734 = vmatprep.subr.bf16.mxu0 0
  %1735 = vmatpush2.bf16.msra.mxu0 0
  %1736 = vmatprep.subr.bf16.mxu0 0
  %1737 = vmatpush2.bf16.msra.mxu0 0
  %1738 = vmatprep.subr.bf16.mxu0 0
  %1739 = vmatpush2.bf16.msra.mxu0 0
  %1740 = vmatprep.subr.bf16.mxu0 0
  %1741 = vmatpush2.bf16.msra.mxu0 0
  %1742 = vmatprep.subr.bf16.mxu0 0
  %1743 = vmatpush2.bf16.msra.mxu0 0
  %1744 = vmatprep.mubr.bf16.mxu0 0
  %1745 = vmatmul.mubr.bf16.gmra.mxu0 %v1686
  %v1746 = vpop.f32.mrf.mxu0
  %v1747 = vadd.f32 0.0, %v1746
  %v1748 = vpop.f32.mrf.mxu0
  %v1749 = vpop.f32.mrf.mxu0
  %v1750 = vadd.f32 0.0, %v1749
  %v1751 = vpop.f32.mrf.mxu0
  %1752 = vmatprep.mubr.bf16.mxu0 0
  %1753 = vmatmul.mubr.bf16.gmra.mxu0 %v1689
  %v1754 = vpop.f32.mrf.mxu0
  %v1755 = vadd.f32 0.0, %v1754
  %v1756 = vpop.f32.mrf.mxu0
  %v1757 = vpop.f32.mrf.mxu0
  %v1758 = vadd.f32 0.0, %v1757
  %v1759 = vpop.f32.mrf.mxu0
  %1760 = vmatprep.mubr.bf16.mxu0 0
  %1761 = vmatmul.mubr.bf16.gmra.mxu0 %v1692
  %v1762 = vpop.f32.mrf.mxu0
  %v1763 = vadd.f32 0.0, %v1762
  %v1764 = vpop.f32.mrf.mxu0
  %v1765 = vpop.f32.mrf.mxu0
  %v1766 = vadd.f32 0.0, %v1765
  %v1767 = vpop.f32.mrf.mxu0
  %1768 = vmatprep.mubr.bf16.mxu0 0
  %1769 = vmatmul.mubr.bf16.gmra.mxu0 %v1695
  %v1770 = vpop.f32.mrf.mxu0
  %v1771 = vadd.f32 0.0, %v1770
  %v1772 = vpop.f32.mrf.mxu0
  %v1773 = vpop.f32.mrf.mxu0
  %v1774 = vadd.f32 0.0, %v1773
  %v1775 = vpop.f32.mrf.mxu0
  %1776 = vmatprep.mubr.bf16.mxu0 0
  %1777 = vmatmul.mubr.bf16.gmra.mxu0 %v1698
  %v1778 = vpop.f32.mrf.mxu0
  %v1779 = vadd.f32 0.0, %v1778
  %v1780 = vpop.f32.mrf.mxu0
  %v1781 = vpop.f32.mrf.mxu0
  %v1782 = vadd.f32 0.0, %v1781
  %v1783 = vpop.f32.mrf.mxu0
  %1784 = vmatprep.mubr.bf16.mxu0 0
  %1785 = vmatmul.mubr.bf16.gmra.mxu0 %v1701
  %v1786 = vpop.f32.mrf.mxu0
  %v1787 = vadd.f32 0.0, %v1786
  %v1788 = vpop.f32.mrf.mxu0
  %v1789 = vpop.f32.mrf.mxu0
  %v1790 = vadd.f32 0.0, %v1789
  %v1791 = vpop.f32.mrf.mxu0
  %1792 = vmatprep.mubr.bf16.mxu0 0
  %1793 = vmatmul.mubr.bf16.gmra.mxu0 %v1704
  %v1794 = vpop.f32.mrf.mxu0
  %v1795 = vadd.f32 0.0, %v1794
  %v1796 = vpop.f32.mrf.mxu0
  %v1797 = vpop.f32.mrf.mxu0
  %v1798 = vadd.f32 0.0, %v1797
  %v1799 = vpop.f32.mrf.mxu0
  %1800 = vmatprep.mubr.bf16.mxu0 0
  %1801 = vmatmul.mubr.bf16.gmra.mxu0 %v1707
  %v1802 = vpop.f32.mrf.mxu0
  %v1803 = vadd.f32 0.0, %v1802
  %v1804 = vpop.f32.mrf.mxu0
  %v1805 = vpop.f32.mrf.mxu0
  %v1806 = vadd.f32 0.0, %v1805
  %v1807 = vpop.f32.mrf.mxu0
  %1808 = vdwg.mxu0
  %v1809 = vadd.f32 %v1610, %v1747
  %v1810 = vadd.f32 %v1611, %v1750
  %v1811 = vadd.f32 %v1612, %v1755
  %v1812 = vadd.f32 %v1613, %v1758
  %v1813 = vadd.f32 %v1614, %v1763
  %v1814 = vadd.f32 %v1615, %v1766
  %v1815 = vadd.f32 %v1616, %v1771
  %v1816 = vadd.f32 %v1617, %v1774
  %v1817 = vadd.f32 %v1618, %v1779
  %v1818 = vadd.f32 %v1619, %v1782
  %v1819 = vadd.f32 %v1620, %v1787
  %v1820 = vadd.f32 %v1621, %v1790
  %v1821 = vadd.f32 %v1622, %v1795
  %v1822 = vadd.f32 %v1623, %v1798
  %v1823 = vadd.f32 %v1624, %v1803
  %v1824 = vadd.f32 %v1625, %v1806
  %s1825 = scalar_lea.vmem %s0, 640
  %v1826 = vld [vmem:[%s1825] sm:$0xf]
  %v1827 = vld [vmem:[%s1825 + $0x8] sm:$0xf]
  %v1828 = vld [vmem:[%s1825 + $0x10] sm:$0xf]
  %v1829 = vld [vmem:[%s1825 + $0x18] sm:$0xf]
  %v1830 = vld [vmem:[%s1825 + $0x20] sm:$0xf]
  %v1831 = vld [vmem:[%s1825 + $0x28] sm:$0xf]
  %v1832 = vld [vmem:[%s1825 + $0x30] sm:$0xf]
  %v1833 = vld [vmem:[%s1825 + $0x38] sm:$0xf]
  %v1834 = vld [vmem:[%s1825 + $0x40] sm:$0xf]
  %v1835 = vld [vmem:[%s1825 + $0x48] sm:$0xf]
  %v1836 = vld [vmem:[%s1825 + $0x50] sm:$0xf]
  %v1837 = vld [vmem:[%s1825 + $0x58] sm:$0xf]
  %v1838 = vld [vmem:[%s1825 + $0x60] sm:$0xf]
  %v1839 = vld [vmem:[%s1825 + $0x68] sm:$0xf]
  %v1840 = vld [vmem:[%s1825 + $0x70] sm:$0xf]
  %v1841 = vld [vmem:[%s1825 + $0x78] sm:$0xf]
  %s1842 = scalar_lea.vmem %s1, 14
  %v1843 = vld [vmem:[%s1842] sm:$0x3]
  %v1860 = vunpack.c.l.b16 %v1826
  %v1861 = vunpack.c.l.b16 %v1827
  %v1862 = vunpack.c.l.b16 %v1828
  %v1863 = vunpack.c.l.b16 %v1829
  %v1864 = vunpack.c.l.b16 %v1830
  %v1865 = vunpack.c.l.b16 %v1831
  %v1866 = vunpack.c.l.b16 %v1832
  %v1867 = vunpack.c.l.b16 %v1833
  %v1868 = vunpack.c.l.b16 %v1834
  %v1869 = vunpack.c.l.b16 %v1835
  %v1870 = vunpack.c.l.b16 %v1836
  %v1871 = vunpack.c.l.b16 %v1837
  %v1872 = vunpack.c.l.b16 %v1838
  %v1873 = vunpack.c.l.b16 %v1839
  %v1874 = vunpack.c.l.b16 %v1840
  %v1875 = vunpack.c.l.b16 %v1841
  %v1876 = vpack.c.b16 %v1861, %v1860
  %v1877 = vpack.c.b16 %v1863, %v1862
  %v1878 = vpack.c.b16 %v1865, %v1864
  %v1879 = vpack.c.b16 %v1867, %v1866
  %v1880 = vpack.c.b16 %v1869, %v1868
  %v1881 = vpack.c.b16 %v1871, %v1870
  %v1882 = vpack.c.b16 %v1873, %v1872
  %v1883 = vpack.c.b16 %v1875, %v1874
  %v1885 = vsel %vm91, %v1876, 0
  %v1888 = vsel %vm91, %v1877, 0
  %v1891 = vsel %vm91, %v1878, 0
  %v1894 = vsel %vm91, %v1879, 0
  %v1897 = vsel %vm91, %v1880, 0
  %v1900 = vsel %vm91, %v1881, 0
  %v1903 = vsel %vm91, %v1882, 0
  %v1906 = vsel %vm91, %v1883, 0
  %v1909 = vsel %vm116, %v1843, 0
  %1911 = vmatprep.subr.bf16.mxu0 0
  %1912 = vmatpush1.bf16.msra.mxu0 0
  %1913 = vmatprep.subr.bf16.mxu0 0
  %1914 = vmatpush1.bf16.msra.mxu0 0
  %1915 = vmatprep.subr.bf16.mxu0 0
  %1916 = vmatpush1.bf16.msra.mxu0 0
  %1917 = vmatprep.subr.bf16.mxu0 0
  %1918 = vmatpush1.bf16.msra.mxu0 0
  %1919 = vmatprep.subr.bf16.mxu0 0
  %1920 = vmatpush1.bf16.msra.mxu0 0
  %1921 = vmatprep.subr.bf16.mxu0 0
  %1922 = vmatpush1.bf16.msra.mxu0 0
  %1923 = vmatprep.subr.bf16.mxu0 0
  %1924 = vmatpush1.bf16.msra.mxu0 0
  %1925 = vmatprep.subr.bf16.mxu0 0
  %1926 = vmatpush1.bf16.msra.mxu0 %v1909
  %1927 = vmatprep.subr.bf16.mxu0 0
  %1928 = vmatpush2.bf16.msra.mxu0 0
  %1929 = vmatprep.subr.bf16.mxu0 0
  %1930 = vmatpush2.bf16.msra.mxu0 0
  %1931 = vmatprep.subr.bf16.mxu0 0
  %1932 = vmatpush2.bf16.msra.mxu0 0
  %1933 = vmatprep.subr.bf16.mxu0 0
  %1934 = vmatpush2.bf16.msra.mxu0 0
  %1935 = vmatprep.subr.bf16.mxu0 0
  %1936 = vmatpush2.bf16.msra.mxu0 0
  %1937 = vmatprep.subr.bf16.mxu0 0
  %1938 = vmatpush2.bf16.msra.mxu0 0
  %1939 = vmatprep.subr.bf16.mxu0 0
  %1940 = vmatpush2.bf16.msra.mxu0 0
  %1941 = vmatprep.subr.bf16.mxu0 0
  %1942 = vmatpush2.bf16.msra.mxu0 0
  %1943 = vmatprep.mubr.bf16.mxu0 0
  %1944 = vmatmul.mubr.bf16.gmra.mxu0 %v1885
  %v1945 = vpop.f32.mrf.mxu0
  %v1946 = vadd.f32 0.0, %v1945
  %v1947 = vpop.f32.mrf.mxu0
  %v1948 = vpop.f32.mrf.mxu0
  %v1949 = vadd.f32 0.0, %v1948
  %v1950 = vpop.f32.mrf.mxu0
  %1951 = vmatprep.mubr.bf16.mxu0 0
  %1952 = vmatmul.mubr.bf16.gmra.mxu0 %v1888
  %v1953 = vpop.f32.mrf.mxu0
  %v1954 = vadd.f32 0.0, %v1953
  %v1955 = vpop.f32.mrf.mxu0
  %v1956 = vpop.f32.mrf.mxu0
  %v1957 = vadd.f32 0.0, %v1956
  %v1958 = vpop.f32.mrf.mxu0
  %1959 = vmatprep.mubr.bf16.mxu0 0
  %1960 = vmatmul.mubr.bf16.gmra.mxu0 %v1891
  %v1961 = vpop.f32.mrf.mxu0
  %v1962 = vadd.f32 0.0, %v1961
  %v1963 = vpop.f32.mrf.mxu0
  %v1964 = vpop.f32.mrf.mxu0
  %v1965 = vadd.f32 0.0, %v1964
  %v1966 = vpop.f32.mrf.mxu0
  %1967 = vmatprep.mubr.bf16.mxu0 0
  %1968 = vmatmul.mubr.bf16.gmra.mxu0 %v1894
  %v1969 = vpop.f32.mrf.mxu0
  %v1970 = vadd.f32 0.0, %v1969
  %v1971 = vpop.f32.mrf.mxu0
  %v1972 = vpop.f32.mrf.mxu0
  %v1973 = vadd.f32 0.0, %v1972
  %v1974 = vpop.f32.mrf.mxu0
  %1975 = vmatprep.mubr.bf16.mxu0 0
  %1976 = vmatmul.mubr.bf16.gmra.mxu0 %v1897
  %v1977 = vpop.f32.mrf.mxu0
  %v1978 = vadd.f32 0.0, %v1977
  %v1979 = vpop.f32.mrf.mxu0
  %v1980 = vpop.f32.mrf.mxu0
  %v1981 = vadd.f32 0.0, %v1980
  %v1982 = vpop.f32.mrf.mxu0
  %1983 = vmatprep.mubr.bf16.mxu0 0
  %1984 = vmatmul.mubr.bf16.gmra.mxu0 %v1900
  %v1985 = vpop.f32.mrf.mxu0
  %v1986 = vadd.f32 0.0, %v1985
  %v1987 = vpop.f32.mrf.mxu0
  %v1988 = vpop.f32.mrf.mxu0
  %v1989 = vadd.f32 0.0, %v1988
  %v1990 = vpop.f32.mrf.mxu0
  %1991 = vmatprep.mubr.bf16.mxu0 0
  %1992 = vmatmul.mubr.bf16.gmra.mxu0 %v1903
  %v1993 = vpop.f32.mrf.mxu0
  %v1994 = vadd.f32 0.0, %v1993
  %v1995 = vpop.f32.mrf.mxu0
  %v1996 = vpop.f32.mrf.mxu0
  %v1997 = vadd.f32 0.0, %v1996
  %v1998 = vpop.f32.mrf.mxu0
  %1999 = vmatprep.mubr.bf16.mxu0 0
  %2000 = vmatmul.mubr.bf16.gmra.mxu0 %v1906
  %v2001 = vpop.f32.mrf.mxu0
  %v2002 = vadd.f32 0.0, %v2001
  %v2003 = vpop.f32.mrf.mxu0
  %v2004 = vpop.f32.mrf.mxu0
  %v2005 = vadd.f32 0.0, %v2004
  %v2006 = vpop.f32.mrf.mxu0
  %2007 = vdwg.mxu0
  %v2008 = vadd.f32 %v1809, %v1946
  %v2009 = vadd.f32 %v1810, %v1949
  %v2010 = vadd.f32 %v1811, %v1954
  %v2011 = vadd.f32 %v1812, %v1957
  %v2012 = vadd.f32 %v1813, %v1962
  %v2013 = vadd.f32 %v1814, %v1965
  %v2014 = vadd.f32 %v1815, %v1970
  %v2015 = vadd.f32 %v1816, %v1973
  %v2016 = vadd.f32 %v1817, %v1978
  %v2017 = vadd.f32 %v1818, %v1981
  %v2018 = vadd.f32 %v1819, %v1986
  %v2019 = vadd.f32 %v1820, %v1989
  %v2020 = vadd.f32 %v1821, %v1994
  %v2021 = vadd.f32 %v1822, %v1997
  %v2022 = vadd.f32 %v1823, %v2002
  %v2023 = vadd.f32 %v1824, %v2005
  %v2024 = vld [vmem:[%s1626] sm:$0xf]
  %v2025 = vld [vmem:[%s1626 + $0x4] sm:$0x1]
  %v2026 = vld [vmem:[%s1626 + $0x8] sm:$0xf]
  %v2027 = vld [vmem:[%s1626 + $0xc] sm:$0x1]
  %v2028 = vld [vmem:[%s1626 + $0x10] sm:$0xf]
  %v2029 = vld [vmem:[%s1626 + $0x14] sm:$0x1]
  %v2030 = vld [vmem:[%s1626 + $0x18] sm:$0xf]
  %v2031 = vld [vmem:[%s1626 + $0x1c] sm:$0x1]
  %v2032 = vld [vmem:[%s1626 + $0x20] sm:$0xf]
  %v2033 = vld [vmem:[%s1626 + $0x24] sm:$0x1]
  %v2034 = vld [vmem:[%s1626 + $0x28] sm:$0xf]
  %v2035 = vld [vmem:[%s1626 + $0x2c] sm:$0x1]
  %v2036 = vld [vmem:[%s1626 + $0x30] sm:$0xf]
  %v2037 = vld [vmem:[%s1626 + $0x34] sm:$0x1]
  %v2038 = vld [vmem:[%s1626 + $0x38] sm:$0xf]
  %v2039 = vld [vmem:[%s1626 + $0x3c] sm:$0x1]
  %v2040 = vld [vmem:[%s1626 + $0x40] sm:$0xf]
  %v2041 = vld [vmem:[%s1626 + $0x44] sm:$0x1]
  %v2042 = vld [vmem:[%s1626 + $0x48] sm:$0xf]
  %v2043 = vld [vmem:[%s1626 + $0x4c] sm:$0x1]
  %v2044 = vld [vmem:[%s1626 + $0x50] sm:$0xf]
  %v2045 = vld [vmem:[%s1626 + $0x54] sm:$0x1]
  %v2046 = vld [vmem:[%s1626 + $0x58] sm:$0xf]
  %v2047 = vld [vmem:[%s1626 + $0x5c] sm:$0x1]
  %v2048 = vld [vmem:[%s1626 + $0x60] sm:$0xf]
  %v2049 = vld [vmem:[%s1626 + $0x64] sm:$0x1]
  %v2050 = vld [vmem:[%s1626 + $0x68] sm:$0xf]
  %v2051 = vld [vmem:[%s1626 + $0x6c] sm:$0x1]
  %v2052 = vld [vmem:[%s1626 + $0x70] sm:$0xf]
  %v2053 = vld [vmem:[%s1626 + $0x74] sm:$0x1]
  %v2054 = vld [vmem:[%s1626 + $0x78] sm:$0xf]
  %v2055 = vld [vmem:[%s1626 + $0x7c] sm:$0x1]
  %v2057 = vshrl.u32 %v2024, 16
  %v2059 = vrot.slane %v2057, 4
  %v2060 = vshll.u32 %v2024, 16
  %v2062 = vrot.slane %v2060, 5
  %v2063 = vor.u32 %v2059, %v2062
  %v2064 = vrot.slane %v2063, 4
  %v2066 = vshll.u32 %v2025, 16
  %v2068 = vrot.slane %v2066, 5
  %v2069 = vsel %vm415, %v2064, %v2068
  %v2071 = vshrl.u32 %v2026, 16
  %v2073 = vrot.slane %v2071, 4
  %v2074 = vshll.u32 %v2026, 16
  %v2076 = vrot.slane %v2074, 5
  %v2077 = vor.u32 %v2073, %v2076
  %v2078 = vrot.slane %v2077, 4
  %v2080 = vshll.u32 %v2027, 16
  %v2082 = vrot.slane %v2080, 5
  %v2083 = vsel %vm415, %v2078, %v2082
  %v2085 = vshrl.u32 %v2028, 16
  %v2087 = vrot.slane %v2085, 4
  %v2088 = vshll.u32 %v2028, 16
  %v2090 = vrot.slane %v2088, 5
  %v2091 = vor.u32 %v2087, %v2090
  %v2092 = vrot.slane %v2091, 4
  %v2094 = vshll.u32 %v2029, 16
  %v2096 = vrot.slane %v2094, 5
  %v2097 = vsel %vm415, %v2092, %v2096
  %v2099 = vshrl.u32 %v2030, 16
  %v2101 = vrot.slane %v2099, 4
  %v2102 = vshll.u32 %v2030, 16
  %v2104 = vrot.slane %v2102, 5
  %v2105 = vor.u32 %v2101, %v2104
  %v2106 = vrot.slane %v2105, 4
  %v2108 = vshll.u32 %v2031, 16
  %v2110 = vrot.slane %v2108, 5
  %v2111 = vsel %vm415, %v2106, %v2110
  %v2113 = vshrl.u32 %v2032, 16
  %v2115 = vrot.slane %v2113, 4
  %v2116 = vshll.u32 %v2032, 16
  %v2118 = vrot.slane %v2116, 5
  %v2119 = vor.u32 %v2115, %v2118
  %v2120 = vrot.slane %v2119, 4
  %v2122 = vshll.u32 %v2033, 16
  %v2124 = vrot.slane %v2122, 5
  %v2125 = vsel %vm415, %v2120, %v2124
  %v2127 = vshrl.u32 %v2034, 16
  %v2129 = vrot.slane %v2127, 4
  %v2130 = vshll.u32 %v2034, 16
  %v2132 = vrot.slane %v2130, 5
  %v2133 = vor.u32 %v2129, %v2132
  %v2134 = vrot.slane %v2133, 4
  %v2136 = vshll.u32 %v2035, 16
  %v2138 = vrot.slane %v2136, 5
  %v2139 = vsel %vm415, %v2134, %v2138
  %v2141 = vshrl.u32 %v2036, 16
  %v2143 = vrot.slane %v2141, 4
  %v2144 = vshll.u32 %v2036, 16
  %v2146 = vrot.slane %v2144, 5
  %v2147 = vor.u32 %v2143, %v2146
  %v2148 = vrot.slane %v2147, 4
  %v2150 = vshll.u32 %v2037, 16
  %v2152 = vrot.slane %v2150, 5
  %v2153 = vsel %vm415, %v2148, %v2152
  %v2155 = vshrl.u32 %v2038, 16
  %v2157 = vrot.slane %v2155, 4
  %v2158 = vshll.u32 %v2038, 16
  %v2160 = vrot.slane %v2158, 5
  %v2161 = vor.u32 %v2157, %v2160
  %v2162 = vrot.slane %v2161, 4
  %v2164 = vshll.u32 %v2039, 16
  %v2166 = vrot.slane %v2164, 5
  %v2167 = vsel %vm415, %v2162, %v2166
  %v2169 = vshrl.u32 %v2040, 16
  %v2171 = vrot.slane %v2169, 4
  %v2172 = vshll.u32 %v2040, 16
  %v2174 = vrot.slane %v2172, 5
  %v2175 = vor.u32 %v2171, %v2174
  %v2176 = vrot.slane %v2175, 4
  %v2178 = vshll.u32 %v2041, 16
  %v2180 = vrot.slane %v2178, 5
  %v2181 = vsel %vm415, %v2176, %v2180
  %v2183 = vshrl.u32 %v2042, 16
  %v2185 = vrot.slane %v2183, 4
  %v2186 = vshll.u32 %v2042, 16
  %v2188 = vrot.slane %v2186, 5
  %v2189 = vor.u32 %v2185, %v2188
  %v2190 = vrot.slane %v2189, 4
  %v2192 = vshll.u32 %v2043, 16
  %v2194 = vrot.slane %v2192, 5
  %v2195 = vsel %vm415, %v2190, %v2194
  %v2197 = vshrl.u32 %v2044, 16
  %v2199 = vrot.slane %v2197, 4
  %v2200 = vshll.u32 %v2044, 16
  %v2202 = vrot.slane %v2200, 5
  %v2203 = vor.u32 %v2199, %v2202
  %v2204 = vrot.slane %v2203, 4
  %v2206 = vshll.u32 %v2045, 16
  %v2208 = vrot.slane %v2206, 5
  %v2209 = vsel %vm415, %v2204, %v2208
  %v2211 = vshrl.u32 %v2046, 16
  %v2213 = vrot.slane %v2211, 4
  %v2214 = vshll.u32 %v2046, 16
  %v2216 = vrot.slane %v2214, 5
  %v2217 = vor.u32 %v2213, %v2216
  %v2218 = vrot.slane %v2217, 4
  %v2220 = vshll.u32 %v2047, 16
  %v2222 = vrot.slane %v2220, 5
  %v2223 = vsel %vm415, %v2218, %v2222
  %v2225 = vshrl.u32 %v2048, 16
  %v2227 = vrot.slane %v2225, 4
  %v2228 = vshll.u32 %v2048, 16
  %v2230 = vrot.slane %v2228, 5
  %v2231 = vor.u32 %v2227, %v2230
  %v2232 = vrot.slane %v2231, 4
  %v2234 = vshll.u32 %v2049, 16
  %v2236 = vrot.slane %v2234, 5
  %v2237 = vsel %vm415, %v2232, %v2236
  %v2239 = vshrl.u32 %v2050, 16
  %v2241 = vrot.slane %v2239, 4
  %v2242 = vshll.u32 %v2050, 16
  %v2244 = vrot.slane %v2242, 5
  %v2245 = vor.u32 %v2241, %v2244
  %v2246 = vrot.slane %v2245, 4
  %v2248 = vshll.u32 %v2051, 16
  %v2250 = vrot.slane %v2248, 5
  %v2251 = vsel %vm415, %v2246, %v2250
  %v2253 = vshrl.u32 %v2052, 16
  %v2255 = vrot.slane %v2253, 4
  %v2256 = vshll.u32 %v2052, 16
  %v2258 = vrot.slane %v2256, 5
  %v2259 = vor.u32 %v2255, %v2258
  %v2260 = vrot.slane %v2259, 4
  %v2262 = vshll.u32 %v2053, 16
  %v2264 = vrot.slane %v2262, 5
  %v2265 = vsel %vm415, %v2260, %v2264
  %v2267 = vshrl.u32 %v2054, 16
  %v2269 = vrot.slane %v2267, 4
  %v2270 = vshll.u32 %v2054, 16
  %v2272 = vrot.slane %v2270, 5
  %v2273 = vor.u32 %v2269, %v2272
  %v2274 = vrot.slane %v2273, 4
  %v2276 = vshll.u32 %v2055, 16
  %v2278 = vrot.slane %v2276, 5
  %v2279 = vsel %vm415, %v2274, %v2278
  %s2280 = scalar_lea.vmem %s1, 16
  %v2281 = vld [vmem:[%s2280] sm:$0x3]
  %v2282 = vunpack.c.l.b16 %v2069
  %v2283 = vunpack.c.l.b16 %v2083
  %v2284 = vunpack.c.l.b16 %v2097
  %v2285 = vunpack.c.l.b16 %v2111
  %v2286 = vunpack.c.l.b16 %v2125
  %v2287 = vunpack.c.l.b16 %v2139
  %v2288 = vunpack.c.l.b16 %v2153
  %v2289 = vunpack.c.l.b16 %v2167
  %v2290 = vunpack.c.l.b16 %v2181
  %v2291 = vunpack.c.l.b16 %v2195
  %v2292 = vunpack.c.l.b16 %v2209
  %v2293 = vunpack.c.l.b16 %v2223
  %v2294 = vunpack.c.l.b16 %v2237
  %v2295 = vunpack.c.l.b16 %v2251
  %v2296 = vunpack.c.l.b16 %v2265
  %v2297 = vunpack.c.l.b16 %v2279
  %v2298 = vpack.c.b16 %v2283, %v2282
  %v2299 = vpack.c.b16 %v2285, %v2284
  %v2300 = vpack.c.b16 %v2287, %v2286
  %v2301 = vpack.c.b16 %v2289, %v2288
  %v2302 = vpack.c.b16 %v2291, %v2290
  %v2303 = vpack.c.b16 %v2293, %v2292
  %v2304 = vpack.c.b16 %v2295, %v2294
  %v2305 = vpack.c.b16 %v2297, %v2296
  %v2307 = vsel %vm91, %v2298, 0
  %v2310 = vsel %vm91, %v2299, 0
  %v2313 = vsel %vm91, %v2300, 0
  %v2316 = vsel %vm91, %v2301, 0
  %v2319 = vsel %vm91, %v2302, 0
  %v2322 = vsel %vm91, %v2303, 0
  %v2325 = vsel %vm91, %v2304, 0
  %v2328 = vsel %vm91, %v2305, 0
  %v2331 = vsel %vm116, %v2281, 0
  %2333 = vmatprep.subr.bf16.mxu0 0
  %2334 = vmatpush1.bf16.msra.mxu0 0
  %2335 = vmatprep.subr.bf16.mxu0 0
  %2336 = vmatpush1.bf16.msra.mxu0 0
  %2337 = vmatprep.subr.bf16.mxu0 0
  %2338 = vmatpush1.bf16.msra.mxu0 0
  %2339 = vmatprep.subr.bf16.mxu0 0
  %2340 = vmatpush1.bf16.msra.mxu0 0
  %2341 = vmatprep.subr.bf16.mxu0 0
  %2342 = vmatpush1.bf16.msra.mxu0 0
  %2343 = vmatprep.subr.bf16.mxu0 0
  %2344 = vmatpush1.bf16.msra.mxu0 0
  %2345 = vmatprep.subr.bf16.mxu0 0
  %2346 = vmatpush1.bf16.msra.mxu0 0
  %2347 = vmatprep.subr.bf16.mxu0 0
  %2348 = vmatpush1.bf16.msra.mxu0 %v2331
  %2349 = vmatprep.subr.bf16.mxu0 0
  %2350 = vmatpush2.bf16.msra.mxu0 0
  %2351 = vmatprep.subr.bf16.mxu0 0
  %2352 = vmatpush2.bf16.msra.mxu0 0
  %2353 = vmatprep.subr.bf16.mxu0 0
  %2354 = vmatpush2.bf16.msra.mxu0 0
  %2355 = vmatprep.subr.bf16.mxu0 0
  %2356 = vmatpush2.bf16.msra.mxu0 0
  %2357 = vmatprep.subr.bf16.mxu0 0
  %2358 = vmatpush2.bf16.msra.mxu0 0
  %2359 = vmatprep.subr.bf16.mxu0 0
  %2360 = vmatpush2.bf16.msra.mxu0 0
  %2361 = vmatprep.subr.bf16.mxu0 0
  %2362 = vmatpush2.bf16.msra.mxu0 0
  %2363 = vmatprep.subr.bf16.mxu0 0
  %2364 = vmatpush2.bf16.msra.mxu0 0
  %2365 = vmatprep.mubr.bf16.mxu0 0
  %2366 = vmatmul.mubr.bf16.gmra.mxu0 %v2307
  %v2367 = vpop.f32.mrf.mxu0
  %v2368 = vadd.f32 0.0, %v2367
  %v2369 = vpop.f32.mrf.mxu0
  %v2370 = vpop.f32.mrf.mxu0
  %v2371 = vadd.f32 0.0, %v2370
  %v2372 = vpop.f32.mrf.mxu0
  %2373 = vmatprep.mubr.bf16.mxu0 0
  %2374 = vmatmul.mubr.bf16.gmra.mxu0 %v2310
  %v2375 = vpop.f32.mrf.mxu0
  %v2376 = vadd.f32 0.0, %v2375
  %v2377 = vpop.f32.mrf.mxu0
  %v2378 = vpop.f32.mrf.mxu0
  %v2379 = vadd.f32 0.0, %v2378
  %v2380 = vpop.f32.mrf.mxu0
  %2381 = vmatprep.mubr.bf16.mxu0 0
  %2382 = vmatmul.mubr.bf16.gmra.mxu0 %v2313
  %v2383 = vpop.f32.mrf.mxu0
  %v2384 = vadd.f32 0.0, %v2383
  %v2385 = vpop.f32.mrf.mxu0
  %v2386 = vpop.f32.mrf.mxu0
  %v2387 = vadd.f32 0.0, %v2386
  %v2388 = vpop.f32.mrf.mxu0
  %2389 = vmatprep.mubr.bf16.mxu0 0
  %2390 = vmatmul.mubr.bf16.gmra.mxu0 %v2316
  %v2391 = vpop.f32.mrf.mxu0
  %v2392 = vadd.f32 0.0, %v2391
  %v2393 = vpop.f32.mrf.mxu0
  %v2394 = vpop.f32.mrf.mxu0
  %v2395 = vadd.f32 0.0, %v2394
  %v2396 = vpop.f32.mrf.mxu0
  %2397 = vmatprep.mubr.bf16.mxu0 0
  %2398 = vmatmul.mubr.bf16.gmra.mxu0 %v2319
  %v2399 = vpop.f32.mrf.mxu0
  %v2400 = vadd.f32 0.0, %v2399
  %v2401 = vpop.f32.mrf.mxu0
  %v2402 = vpop.f32.mrf.mxu0
  %v2403 = vadd.f32 0.0, %v2402
  %v2404 = vpop.f32.mrf.mxu0
  %2405 = vmatprep.mubr.bf16.mxu0 0
  %2406 = vmatmul.mubr.bf16.gmra.mxu0 %v2322
  %v2407 = vpop.f32.mrf.mxu0
  %v2408 = vadd.f32 0.0, %v2407
  %v2409 = vpop.f32.mrf.mxu0
  %v2410 = vpop.f32.mrf.mxu0
  %v2411 = vadd.f32 0.0, %v2410
  %v2412 = vpop.f32.mrf.mxu0
  %2413 = vmatprep.mubr.bf16.mxu0 0
  %2414 = vmatmul.mubr.bf16.gmra.mxu0 %v2325
  %v2415 = vpop.f32.mrf.mxu0
  %v2416 = vadd.f32 0.0, %v2415
  %v2417 = vpop.f32.mrf.mxu0
  %v2418 = vpop.f32.mrf.mxu0
  %v2419 = vadd.f32 0.0, %v2418
  %v2420 = vpop.f32.mrf.mxu0
  %2421 = vmatprep.mubr.bf16.mxu0 0
  %2422 = vmatmul.mubr.bf16.gmra.mxu0 %v2328
  %v2423 = vpop.f32.mrf.mxu0
  %v2424 = vadd.f32 0.0, %v2423
  %v2425 = vpop.f32.mrf.mxu0
  %v2426 = vpop.f32.mrf.mxu0
  %v2427 = vadd.f32 0.0, %v2426
  %v2428 = vpop.f32.mrf.mxu0
  %2429 = vdwg.mxu0
  %v2430 = vadd.f32 %v2008, %v2368
  %v2431 = vadd.f32 %v2009, %v2371
  %v2432 = vadd.f32 %v2010, %v2376
  %v2433 = vadd.f32 %v2011, %v2379
  %v2434 = vadd.f32 %v2012, %v2384
  %v2435 = vadd.f32 %v2013, %v2387
  %v2436 = vadd.f32 %v2014, %v2392
  %v2437 = vadd.f32 %v2015, %v2395
  %v2438 = vadd.f32 %v2016, %v2400
  %v2439 = vadd.f32 %v2017, %v2403
  %v2440 = vadd.f32 %v2018, %v2408
  %v2441 = vadd.f32 %v2019, %v2411
  %v2442 = vadd.f32 %v2020, %v2416
  %v2443 = vadd.f32 %v2021, %v2419
  %v2444 = vadd.f32 %v2022, %v2424
  %v2445 = vadd.f32 %v2023, %v2427
  %v2446 = vld [vmem:[%s2] sm:$0x1]
  %v2448 = vlaneseq
  %v2449 = vshrl.u32 %v2448, 7
  %v2450 = vsub.s32 0, %v2449
  %v2451 = vrot.slane %v2446, %v2450
  %v2453 = vadd.f32 %v2430, %v2451
  %v2454 = vadd.f32 %v2431, %v2451
  %v2455 = vadd.f32 %v2432, %v2451
  %v2456 = vadd.f32 %v2433, %v2451
  %v2457 = vadd.f32 %v2434, %v2451
  %v2458 = vadd.f32 %v2435, %v2451
  %v2459 = vadd.f32 %v2436, %v2451
  %v2460 = vadd.f32 %v2437, %v2451
  %v2461 = vadd.f32 %v2438, %v2451
  %v2462 = vadd.f32 %v2439, %v2451
  %v2463 = vadd.f32 %v2440, %v2451
  %v2464 = vadd.f32 %v2441, %v2451
  %v2465 = vadd.f32 %v2442, %v2451
  %v2466 = vadd.f32 %v2443, %v2451
  %v2467 = vadd.f32 %v2444, %v2451
  %v2468 = vadd.f32 %v2445, %v2451
  %vm2469 = vcmp.ge.f32.partialorder %v2453, 0.0
  %vm2470 = vcmp.ge.f32.partialorder %v2454, 0.0
  %vm2471 = vcmp.ge.f32.partialorder %v2455, 0.0
  %vm2472 = vcmp.ge.f32.partialorder %v2456, 0.0
  %vm2473 = vcmp.ge.f32.partialorder %v2457, 0.0
  %vm2474 = vcmp.ge.f32.partialorder %v2458, 0.0
  %vm2475 = vcmp.ge.f32.partialorder %v2459, 0.0
  %vm2476 = vcmp.ge.f32.partialorder %v2460, 0.0
  %vm2477 = vcmp.ge.f32.partialorder %v2461, 0.0
  %vm2478 = vcmp.ge.f32.partialorder %v2462, 0.0
  %vm2479 = vcmp.ge.f32.partialorder %v2463, 0.0
  %vm2480 = vcmp.ge.f32.partialorder %v2464, 0.0
  %vm2481 = vcmp.ge.f32.partialorder %v2465, 0.0
  %vm2482 = vcmp.ge.f32.partialorder %v2466, 0.0
  %vm2483 = vcmp.ge.f32.partialorder %v2467, 0.0
  %vm2484 = vcmp.ge.f32.partialorder %v2468, 0.0
  %v2485 = vmul.f32 %v2453, 0.01
  %v2486 = vmul.f32 %v2454, 0.01
  %v2487 = vmul.f32 %v2455, 0.01
  %v2488 = vmul.f32 %v2456, 0.01
  %v2489 = vmul.f32 %v2457, 0.01
  %v2490 = vmul.f32 %v2458, 0.01
  %v2491 = vmul.f32 %v2459, 0.01
  %v2492 = vmul.f32 %v2460, 0.01
  %v2493 = vmul.f32 %v2461, 0.01
  %v2494 = vmul.f32 %v2462, 0.01
  %v2495 = vmul.f32 %v2463, 0.01
  %v2496 = vmul.f32 %v2464, 0.01
  %v2497 = vmul.f32 %v2465, 0.01
  %v2498 = vmul.f32 %v2466, 0.01
  %v2499 = vmul.f32 %v2467, 0.01
  %v2500 = vmul.f32 %v2468, 0.01
  %v2501 = vsel %vm2469, %v2453, %v2485
  %v2502 = vsel %vm2470, %v2454, %v2486
  %v2503 = vsel %vm2471, %v2455, %v2487
  %v2504 = vsel %vm2472, %v2456, %v2488
  %v2505 = vsel %vm2473, %v2457, %v2489
  %v2506 = vsel %vm2474, %v2458, %v2490
  %v2507 = vsel %vm2475, %v2459, %v2491
  %v2508 = vsel %vm2476, %v2460, %v2492
  %v2509 = vsel %vm2477, %v2461, %v2493
  %v2510 = vsel %vm2478, %v2462, %v2494
  %v2511 = vsel %vm2479, %v2463, %v2495
  %v2512 = vsel %vm2480, %v2464, %v2496
  %v2513 = vsel %vm2481, %v2465, %v2497
  %v2514 = vsel %vm2482, %v2466, %v2498
  %v2515 = vsel %vm2483, %v2467, %v2499
  %v2516 = vsel %vm2484, %v2468, %v2500
  %2517 = vst.msk [vmem:[%s3] sm:$0xff] %vm91, %v2501
  %2518 = vst.msk [vmem:[%s3 + $0x8] sm:$0xff] %vm91, %v2502
  %2519 = vst.msk [vmem:[%s3 + $0x10] sm:$0xff] %vm91, %v2503
  %2520 = vst.msk [vmem:[%s3 + $0x18] sm:$0xff] %vm91, %v2504
  %2521 = vst.msk [vmem:[%s3 + $0x20] sm:$0xff] %vm91, %v2505
  %2522 = vst.msk [vmem:[%s3 + $0x28] sm:$0xff] %vm91, %v2506
  %2523 = vst.msk [vmem:[%s3 + $0x30] sm:$0xff] %vm91, %v2507
  %2524 = vst.msk [vmem:[%s3 + $0x38] sm:$0xff] %vm91, %v2508
  %2525 = vst.msk [vmem:[%s3 + $0x40] sm:$0xff] %vm91, %v2509
  %2526 = vst.msk [vmem:[%s3 + $0x48] sm:$0xff] %vm91, %v2510
  %2527 = vst.msk [vmem:[%s3 + $0x50] sm:$0xff] %vm91, %v2511
  %2528 = vst.msk [vmem:[%s3 + $0x58] sm:$0xff] %vm91, %v2512
  %2529 = vst.msk [vmem:[%s3 + $0x60] sm:$0xff] %vm91, %v2513
  %2530 = vst.msk [vmem:[%s3 + $0x68] sm:$0xff] %vm91, %v2514
  %2531 = vst.msk [vmem:[%s3 + $0x70] sm:$0xff] %vm91, %v2515
  %2532 = vst.msk [vmem:[%s3 + $0x78] sm:$0xff] %vm91, %v2516
  // Predicated region
  $region14: #{downsample_forward.1} parent=0 // pred_check
    _
  $region15: #{downsample_forward.1} parent=0 // pred_check_branch
    %2534 = sbr.rel (0) target = $region17
  $region16: #{downsample_forward.1} parent=0 // pred_region
    _
  $region17: #{downsample_forward.1} parent=0 // pred_fallthru
    _
  // Predicated region
  $region18: #{downsample_forward.1} parent=0 // pred_check
    _
  $region19: #{downsample_forward.1} parent=0 // pred_check_branch
    %2536 = sbr.rel (0) target = $region21
  $region20: #{downsample_forward.1} parent=0 // pred_region
    _
  $region21: #{downsample_forward.1} parent=0 // pred_fallthru
    _

</llo_original>
